<compile_context>
chip_gen: v7x
topology: tpu7x:2x2x1
jax: 0.10.0
libtpu: 0.0.40
codegen_flags: <defaults>
</compile_context>

<pallas_src>
import functools

import jax
import jax.numpy as jnp
from jax.experimental import pallas as pl
from jax.experimental.pallas import tpu as pltpu


def _mha_kernel(xq_ref, xkv_ref, wq_ref, bq_ref, wkv_ref, bkv_ref,
                wf_ref, bf_ref, o_ref, kv_scr, q_scr,
                *, num_heads, head_dim):
    H, hd = num_heads, head_dim

    # ---- K/V projection: once per batch (query-tile index 0). ------------
    @pl.when(pl.program_id(1) == 0)
    def _project_kv():
        xk = xkv_ref[0].astype(jnp.bfloat16)                      # (S, D)
        kv2d = jnp.dot(xk, wkv_ref[...],
                       preferred_element_type=jnp.float32)        # (S, 2D) f32
        kv2d = kv2d + bkv_ref[...]
        # Head-major relayout into the persistent scratch: group g < H is
        # K head g, group g >= H is V head (g - H).
        for g in range(2 * H):
            kv_scr[g] = kv2d[:, g * hd:(g + 1) * hd].astype(jnp.bfloat16)

    # ---- Q projection for this query tile (scale+bias folded into wq/bq). -
    xq = xq_ref[0].astype(jnp.bfloat16)                           # (tq, D)
    q2d = jnp.dot(xq, wq_ref[...],
                  preferred_element_type=jnp.float32) + bq_ref[...]
    for h in range(H):
        q_scr[h] = q2d[:, h * hd:(h + 1) * hd].astype(jnp.bfloat16)

    q = q_scr[...]                                                # (H, tq, hd)
    kv = kv_scr[...]                                              # (2H, S, hd)
    k = kv[:H]
    v = kv[H:]

    # ---- Scores + softmax (max/exp/sum kept in f32: valid on v5e too). ----
    s = jnp.einsum('hqd,hkd->hqk', q, k,
                   preferred_element_type=jnp.float32)            # (H, tq, S)
    m = jnp.max(s, axis=-1, keepdims=True)
    e = jnp.exp(s - m)
    denom = jnp.sum(e, axis=-1, keepdims=True)
    p = (e * pl.reciprocal(denom, approx=True)).astype(jnp.bfloat16)

    att = jnp.einsum('hqk,hkd->hqd', p, v,
                     preferred_element_type=jnp.float32)          # (H, tq, hd)

    # ---- Output projection: one lane-dense (tq, D) @ (D, D) matmul. -------
    att2d = jnp.concatenate([att[h] for h in range(H)], axis=-1)  # (tq, D)
    out = jnp.dot(att2d.astype(jnp.bfloat16), wf_ref[...],
                  preferred_element_type=jnp.float32) + bf_ref[...]
    o_ref[0] = out.astype(o_ref.dtype)


def pack_mha_params(params, num_heads):
    """One-time repack of the params for the kernel (hoisted out of hot path).

    Weights are (in_features, out_features) so that y = x @ W + b (transposed
    vs. torch.nn.Linear.weight).  The 1/sqrt(head_dim) softmax scale is folded
    into the Q weight/bias; K and V are packed into one (D, 2D) matrix so the
    K/V projection is a single lane-dense matmul.
    """
    wq, bq, wk, bk, wv, bv, wf, bf = params
    D = wq.shape[0]
    hd = D // num_heads
    scale = 1.0 / (hd ** 0.5)
    wq_p = (wq * scale).astype(jnp.bfloat16)                          # (D, D)
    bq_p = (bq * scale).reshape(1, D).astype(jnp.float32)             # (1, D)
    wkv_p = jnp.concatenate([wk, wv], axis=1).astype(jnp.bfloat16)    # (D, 2D)
    bkv_p = jnp.concatenate([bk, bv]).reshape(1, 2 * D).astype(jnp.float32)
    wf_p = wf.astype(jnp.bfloat16)                                    # (D, D)
    bf_p = bf.reshape(1, D).astype(jnp.float32)                       # (1, D)
    return wq_p, bq_p, wkv_p, bkv_p, wf_p, bf_p


def self_multihead_attention(x, packed_params, num_heads, *, q_tile=None):
    """x: (B, S, D) float32; packed_params from pack_mha_params."""
    B, S, D = x.shape
    assert D % num_heads == 0, (D, num_heads)
    H = num_heads
    hd = D // H
    wq_p, bq_p, wkv_p, bkv_p, wf_p, bf_p = packed_params

    if q_tile is None:
        q_tile = S if (S <= 128 or S % 128 != 0) else 128
    assert S % q_tile == 0 and (q_tile == S or q_tile % 8 == 0), (S, q_tile)
    n_q = S // q_tile

    kernel = functools.partial(_mha_kernel, num_heads=H, head_dim=hd)

    # VMEM budget: double-buffered x/out blocks + weights, head-major
    # scratches (lane-padded), per-tile score/prob live set, plus headroom.
    rup = lambda v, m: ((v + m - 1) // m) * m
    hd_pad = rup(hd, 128)
    scr_bytes = (2 * H * rup(S, 16) + H * rup(q_tile, 16)) * hd_pad * 2
    blk_bytes = 2 * (S * D + 2 * q_tile * D) * 4
    wgt_bytes = 2 * (4 * D * D * 2 + 4 * D * 4)
    live_bytes = 4 * H * q_tile * S * 4 + 6 * q_tile * D * 4
    vmem_limit = min(max(scr_bytes + blk_bytes + wgt_bytes + live_bytes
                         + (8 << 20), 32 << 20), 64 << 20)

    flops = 8 * B * S * D * D + 4 * B * S * S * D
    bytes_accessed = (2 * B * S * D * 4      # x read for Q tiles + K/V rows
                      + 4 * D * D * 2        # bf16 weights
                      + 4 * D * 4            # f32 biases
                      + B * S * D * 4)       # output
    cost = pl.CostEstimate(flops=flops, transcendentals=B * H * S * S,
                           bytes_accessed=bytes_accessed)

    grid_spec = pltpu.PrefetchScalarGridSpec(
        num_scalar_prefetch=0,
        grid=(B, n_q),
        in_specs=[
            pl.BlockSpec((1, q_tile, D), lambda b, qi: (b, qi, 0)),   # x (Q rows)
            pl.BlockSpec((1, S, D), lambda b, qi: (b, 0, 0)),         # x (K/V rows)
            pl.BlockSpec((D, D), lambda b, qi: (0, 0)),               # wq (scaled)
            pl.BlockSpec((1, D), lambda b, qi: (0, 0)),               # bq (scaled)
            pl.BlockSpec((D, 2 * D), lambda b, qi: (0, 0)),           # wkv
            pl.BlockSpec((1, 2 * D), lambda b, qi: (0, 0)),           # bkv
            pl.BlockSpec((D, D), lambda b, qi: (0, 0)),               # wf
            pl.BlockSpec((1, D), lambda b, qi: (0, 0)),               # bf
        ],
        out_specs=pl.BlockSpec((1, q_tile, D), lambda b, qi: (b, qi, 0)),
        scratch_shapes=[
            pltpu.VMEM((2 * H, S, hd), jnp.bfloat16),     # head-major K/V cache
            pltpu.VMEM((H, q_tile, hd), jnp.bfloat16),    # head-major Q tile
        ],
    )

    return pl.pallas_call(
        kernel,
        out_shape=jax.ShapeDtypeStruct((B, S, D), x.dtype),
        grid_spec=grid_spec,
        compiler_params=pltpu.CompilerParams(
            dimension_semantics=("parallel", "arbitrary"),
            vmem_limit_bytes=int(vmem_limit)),
        cost_estimate=cost,
    )(x, x, wq_p, bq_p, wkv_p, bkv_p, wf_p, bf_p)


def _reference(x, params, num_heads):
    """Pure-JAX f32 reference mirroring the PyTorch forward (eval mode)."""
    B, S, D = x.shape
    hd = D // num_heads
    wq, bq, wk, bk, wv, bv, wf, bf = params
    q = (x @ wq + bq).reshape(B, S, num_heads, hd)
    k = (x @ wk + bk).reshape(B, S, num_heads, hd)
    v = (x @ wv + bv).reshape(B, S, num_heads, hd)
    scores = jnp.einsum('bqhd,bkhd->bhqk', q, k) / (hd ** 0.5)
    weights = jax.nn.softmax(scores, axis=-1)
    att = jnp.einsum('bhqk,bkhd->bqhd', weights, v).reshape(B, S, D)
    return att @ wf + bf


if __name__ == "__main__":
    # Small, lane-friendly shapes: D multiple of 128 so projections / output
    # stores are lane-dense; num_heads=8 (module default) -> head_dim = 32.
    B, S, D = 2, 32, 256
    NUM_HEADS = 8

    key = jax.random.PRNGKey(0)
    ks = jax.random.split(key, 9)
    x = jax.random.normal(ks[0], (B, S, D), dtype=jnp.float32)

    def lin(kw, kb):
        w = 0.1 * jax.random.normal(kw, (D, D), dtype=jnp.float32)
        b = 0.1 * jax.random.normal(kb, (D,), dtype=jnp.float32)
        return w, b

    wq, bq = lin(ks[1], ks[2])
    wk, bk = lin(ks[3], ks[4])
    wv, bv = lin(ks[5], ks[6])
    wf, bf = lin(ks[7], ks[8])
    params = (wq, bq, wk, bk, wv, bv, wf, bf)

    packed = pack_mha_params(params, NUM_HEADS)   # one-time repack (hoisted)
    # q_tile=16 (< S) so the demo exercises the multi-tile path and the
    # K/V-scratch carry across the "arbitrary" query-tile grid axis.
    out = self_multihead_attention(x, packed, NUM_HEADS, q_tile=16)
    out = jax.block_until_ready(out)

    ref = _reference(x, params, NUM_HEADS)
    assert out.shape == (B, S, D), out.shape
    # bf16 MXU operands with f32 accumulation + approximate reciprocal in the
    # softmax -> compare with loosened tolerance against the f32 reference.
    err = float(jnp.max(jnp.abs(out - ref)))
    assert jnp.allclose(out, ref, atol=1e-1, rtol=1e-1), err

    print("KERNEL_OK")
</pallas_src>

<mosaic_0001>
module attributes {stable_mosaic.version = 11 : i64} {
  func.func @_mha_kernel(%arg0: i32, %arg1: i32, %arg2: memref<1x16x256xf32, #tpu.memory_space<vmem>>, %arg3: memref<1x32x256xf32, #tpu.memory_space<vmem>>, %arg4: memref<256x256xbf16, #tpu.memory_space<vmem>>, %arg5: memref<1x256xf32, #tpu.memory_space<vmem>>, %arg6: memref<256x512xbf16, #tpu.memory_space<vmem>>, %arg7: memref<1x512xf32, #tpu.memory_space<vmem>>, %arg8: memref<256x256xbf16, #tpu.memory_space<vmem>>, %arg9: memref<1x256xf32, #tpu.memory_space<vmem>>, %arg10: memref<1x16x256xf32, #tpu.memory_space<vmem>>, %arg11: memref<16x32x32xbf16, #tpu.memory_space<vmem>>, %arg12: memref<8x16x32xbf16, #tpu.memory_space<vmem>>) attributes {dimension_semantics = [#tpu.dimension_semantics<parallel>, #tpu.dimension_semantics<arbitrary>], iteration_bounds = array<i64: 2, 2>, scalar_prefetch = 0 : i64, scratch_operands = 2 : i64, tpu.core_type = #tpu.core_type<tc>, window_params = [{transform_indices = @transform_0, window_bounds = array<i64: 1, 16, 256>}, {transform_indices = @transform_1, window_bounds = array<i64: 1, 32, 256>}, {pipeline_mode = #tpu.pipeline_mode<synchronous>, transform_indices = @transform_2, window_bounds = array<i64: 256, 256>}, {pipeline_mode = #tpu.pipeline_mode<synchronous>, transform_indices = @transform_3, window_bounds = array<i64: 1, 256>}, {pipeline_mode = #tpu.pipeline_mode<synchronous>, transform_indices = @transform_4, window_bounds = array<i64: 256, 512>}, {pipeline_mode = #tpu.pipeline_mode<synchronous>, transform_indices = @transform_5, window_bounds = array<i64: 1, 512>}, {pipeline_mode = #tpu.pipeline_mode<synchronous>, transform_indices = @transform_6, window_bounds = array<i64: 256, 256>}, {pipeline_mode = #tpu.pipeline_mode<synchronous>, transform_indices = @transform_7, window_bounds = array<i64: 1, 256>}, {transform_indices = @transform_8, window_bounds = array<i64: 1, 16, 256>}]} {
    %c0_i32 = arith.constant 0 : i32
    %0 = arith.cmpi eq, %arg1, %c0_i32 : i32
    %1 = arith.extui %0 : i1 to i32
    %c0_i32_0 = arith.constant 0 : i32
    %2 = arith.cmpi ne, %1, %c0_i32_0 : i32
    scf.if %2 {
      %c0_42 = arith.constant 0 : index
      %c0_43 = arith.constant 0 : index
      %c0_44 = arith.constant 0 : index
      %94 = vector.load %arg3[%c0_42, %c0_43, %c0_44] : memref<1x32x256xf32, #tpu.memory_space<vmem>>, vector<1x32x256xf32>
      %95 = vector.shape_cast %94 : vector<1x32x256xf32> to vector<32x256xf32>
      %96 = arith.truncf %95 : vector<32x256xf32> to vector<32x256xbf16>
      %c0_45 = arith.constant 0 : index
      %c0_46 = arith.constant 0 : index
      %97 = vector.load %arg6[%c0_45, %c0_46] : memref<256x512xbf16, #tpu.memory_space<vmem>>, vector<256x512xbf16>
      %cst_47 = arith.constant dense<0.000000e+00> : vector<32x512xf32>
      %98 = tpu.matmul %96, %97, %cst_47 {dimension_numbers = #tpu.dot_dimension_numbers<[1], [0], [0], [1], [0, 0, 1, 1], [], []>} : vector<32x256xbf16>, vector<256x512xbf16>, vector<32x512xf32> -> vector<32x512xf32>
      %c0_48 = arith.constant 0 : index
      %c0_49 = arith.constant 0 : index
      %99 = vector.load %arg7[%c0_48, %c0_49] : memref<1x512xf32, #tpu.memory_space<vmem>>, vector<1x512xf32>
      %100 = vector.broadcast %99 : vector<1x512xf32> to vector<32x512xf32>
      %101 = arith.addf %98, %100 : vector<32x512xf32>
      %102 = vector.extract_strided_slice %101 {offsets = [0, 0], sizes = [32, 32], strides = [1, 1]} : vector<32x512xf32> to vector<32x32xf32>
      %103 = arith.truncf %102 : vector<32x32xf32> to vector<32x32xbf16>
      %c0_50 = arith.constant 0 : index
      %c0_51 = arith.constant 0 : index
      %c0_52 = arith.constant 0 : index
      %104 = vector.load %arg11[%c0_50, %c0_51, %c0_52] : memref<16x32x32xbf16, #tpu.memory_space<vmem>>, vector<1x32x32xbf16>
      %105 = vector.shape_cast %104 : vector<1x32x32xbf16> to vector<32x32xbf16>
      %106 = vector.shape_cast %103 : vector<32x32xbf16> to vector<1x32x32xbf16>
      tpu.vector_store %arg11[%c0_50, %c0_51, %c0_52], %106 {strides = array<i32>} : memref<16x32x32xbf16, #tpu.memory_space<vmem>>, vector<1x32x32xbf16>,
      %107 = vector.extract_strided_slice %101 {offsets = [0, 32], sizes = [32, 32], strides = [1, 1]} : vector<32x512xf32> to vector<32x32xf32>
      %108 = arith.truncf %107 : vector<32x32xf32> to vector<32x32xbf16>
      %c1_53 = arith.constant 1 : index
      %c0_54 = arith.constant 0 : index
      %c0_55 = arith.constant 0 : index
      %109 = vector.load %arg11[%c1_53, %c0_54, %c0_55] : memref<16x32x32xbf16, #tpu.memory_space<vmem>>, vector<1x32x32xbf16>
      %110 = vector.shape_cast %109 : vector<1x32x32xbf16> to vector<32x32xbf16>
      %111 = vector.shape_cast %108 : vector<32x32xbf16> to vector<1x32x32xbf16>
      tpu.vector_store %arg11[%c1_53, %c0_54, %c0_55], %111 {strides = array<i32>} : memref<16x32x32xbf16, #tpu.memory_space<vmem>>, vector<1x32x32xbf16>,
      %112 = vector.extract_strided_slice %101 {offsets = [0, 64], sizes = [32, 32], strides = [1, 1]} : vector<32x512xf32> to vector<32x32xf32>
      %113 = arith.truncf %112 : vector<32x32xf32> to vector<32x32xbf16>
      %c2_56 = arith.constant 2 : index
      %c0_57 = arith.constant 0 : index
      %c0_58 = arith.constant 0 : index
      %114 = vector.load %arg11[%c2_56, %c0_57, %c0_58] : memref<16x32x32xbf16, #tpu.memory_space<vmem>>, vector<1x32x32xbf16>
      %115 = vector.shape_cast %114 : vector<1x32x32xbf16> to vector<32x32xbf16>
      %116 = vector.shape_cast %113 : vector<32x32xbf16> to vector<1x32x32xbf16>
      tpu.vector_store %arg11[%c2_56, %c0_57, %c0_58], %116 {strides = array<i32>} : memref<16x32x32xbf16, #tpu.memory_space<vmem>>, vector<1x32x32xbf16>,
      %117 = vector.extract_strided_slice %101 {offsets = [0, 96], sizes = [32, 32], strides = [1, 1]} : vector<32x512xf32> to vector<32x32xf32>
      %118 = arith.truncf %117 : vector<32x32xf32> to vector<32x32xbf16>
      %c3_59 = arith.constant 3 : index
      %c0_60 = arith.constant 0 : index
      %c0_61 = arith.constant 0 : index
      %119 = vector.load %arg11[%c3_59, %c0_60, %c0_61] : memref<16x32x32xbf16, #tpu.memory_space<vmem>>, vector<1x32x32xbf16>
      %120 = vector.shape_cast %119 : vector<1x32x32xbf16> to vector<32x32xbf16>
      %121 = vector.shape_cast %118 : vector<32x32xbf16> to vector<1x32x32xbf16>
      tpu.vector_store %arg11[%c3_59, %c0_60, %c0_61], %121 {strides = array<i32>} : memref<16x32x32xbf16, #tpu.memory_space<vmem>>, vector<1x32x32xbf16>,
      %122 = vector.extract_strided_slice %101 {offsets = [0, 128], sizes = [32, 32], strides = [1, 1]} : vector<32x512xf32> to vector<32x32xf32>
      %123 = arith.truncf %122 : vector<32x32xf32> to vector<32x32xbf16>
      %c4_62 = arith.constant 4 : index
      %c0_63 = arith.constant 0 : index
      %c0_64 = arith.constant 0 : index
      %124 = vector.load %arg11[%c4_62, %c0_63, %c0_64] : memref<16x32x32xbf16, #tpu.memory_space<vmem>>, vector<1x32x32xbf16>
      %125 = vector.shape_cast %124 : vector<1x32x32xbf16> to vector<32x32xbf16>
      %126 = vector.shape_cast %123 : vector<32x32xbf16> to vector<1x32x32xbf16>
      tpu.vector_store %arg11[%c4_62, %c0_63, %c0_64], %126 {strides = array<i32>} : memref<16x32x32xbf16, #tpu.memory_space<vmem>>, vector<1x32x32xbf16>,
      %127 = vector.extract_strided_slice %101 {offsets = [0, 160], sizes = [32, 32], strides = [1, 1]} : vector<32x512xf32> to vector<32x32xf32>
      %128 = arith.truncf %127 : vector<32x32xf32> to vector<32x32xbf16>
      %c5_65 = arith.constant 5 : index
      %c0_66 = arith.constant 0 : index
      %c0_67 = arith.constant 0 : index
      %129 = vector.load %arg11[%c5_65, %c0_66, %c0_67] : memref<16x32x32xbf16, #tpu.memory_space<vmem>>, vector<1x32x32xbf16>
      %130 = vector.shape_cast %129 : vector<1x32x32xbf16> to vector<32x32xbf16>
      %131 = vector.shape_cast %128 : vector<32x32xbf16> to vector<1x32x32xbf16>
      tpu.vector_store %arg11[%c5_65, %c0_66, %c0_67], %131 {strides = array<i32>} : memref<16x32x32xbf16, #tpu.memory_space<vmem>>, vector<1x32x32xbf16>,
      %132 = vector.extract_strided_slice %101 {offsets = [0, 192], sizes = [32, 32], strides = [1, 1]} : vector<32x512xf32> to vector<32x32xf32>
      %133 = arith.truncf %132 : vector<32x32xf32> to vector<32x32xbf16>
      %c6_68 = arith.constant 6 : index
      %c0_69 = arith.constant 0 : index
      %c0_70 = arith.constant 0 : index
      %134 = vector.load %arg11[%c6_68, %c0_69, %c0_70] : memref<16x32x32xbf16, #tpu.memory_space<vmem>>, vector<1x32x32xbf16>
      %135 = vector.shape_cast %134 : vector<1x32x32xbf16> to vector<32x32xbf16>
      %136 = vector.shape_cast %133 : vector<32x32xbf16> to vector<1x32x32xbf16>
      tpu.vector_store %arg11[%c6_68, %c0_69, %c0_70], %136 {strides = array<i32>} : memref<16x32x32xbf16, #tpu.memory_space<vmem>>, vector<1x32x32xbf16>,
      %137 = vector.extract_strided_slice %101 {offsets = [0, 224], sizes = [32, 32], strides = [1, 1]} : vector<32x512xf32> to vector<32x32xf32>
      %138 = arith.truncf %137 : vector<32x32xf32> to vector<32x32xbf16>
      %c7_71 = arith.constant 7 : index
      %c0_72 = arith.constant 0 : index
      %c0_73 = arith.constant 0 : index
      %139 = vector.load %arg11[%c7_71, %c0_72, %c0_73] : memref<16x32x32xbf16, #tpu.memory_space<vmem>>, vector<1x32x32xbf16>
      %140 = vector.shape_cast %139 : vector<1x32x32xbf16> to vector<32x32xbf16>
      %141 = vector.shape_cast %138 : vector<32x32xbf16> to vector<1x32x32xbf16>
      tpu.vector_store %arg11[%c7_71, %c0_72, %c0_73], %141 {strides = array<i32>} : memref<16x32x32xbf16, #tpu.memory_space<vmem>>, vector<1x32x32xbf16>,
      %142 = vector.extract_strided_slice %101 {offsets = [0, 256], sizes = [32, 32], strides = [1, 1]} : vector<32x512xf32> to vector<32x32xf32>
      %143 = arith.truncf %142 : vector<32x32xf32> to vector<32x32xbf16>
      %c8 = arith.constant 8 : index
      %c0_74 = arith.constant 0 : index
      %c0_75 = arith.constant 0 : index
      %144 = vector.load %arg11[%c8, %c0_74, %c0_75] : memref<16x32x32xbf16, #tpu.memory_space<vmem>>, vector<1x32x32xbf16>
      %145 = vector.shape_cast %144 : vector<1x32x32xbf16> to vector<32x32xbf16>
      %146 = vector.shape_cast %143 : vector<32x32xbf16> to vector<1x32x32xbf16>
      tpu.vector_store %arg11[%c8, %c0_74, %c0_75], %146 {strides = array<i32>} : memref<16x32x32xbf16, #tpu.memory_space<vmem>>, vector<1x32x32xbf16>,
      %147 = vector.extract_strided_slice %101 {offsets = [0, 288], sizes = [32, 32], strides = [1, 1]} : vector<32x512xf32> to vector<32x32xf32>
      %148 = arith.truncf %147 : vector<32x32xf32> to vector<32x32xbf16>
      %c9 = arith.constant 9 : index
      %c0_76 = arith.constant 0 : index
      %c0_77 = arith.constant 0 : index
      %149 = vector.load %arg11[%c9, %c0_76, %c0_77] : memref<16x32x32xbf16, #tpu.memory_space<vmem>>, vector<1x32x32xbf16>
      %150 = vector.shape_cast %149 : vector<1x32x32xbf16> to vector<32x32xbf16>
      %151 = vector.shape_cast %148 : vector<32x32xbf16> to vector<1x32x32xbf16>
      tpu.vector_store %arg11[%c9, %c0_76, %c0_77], %151 {strides = array<i32>} : memref<16x32x32xbf16, #tpu.memory_space<vmem>>, vector<1x32x32xbf16>,
      %152 = vector.extract_strided_slice %101 {offsets = [0, 320], sizes = [32, 32], strides = [1, 1]} : vector<32x512xf32> to vector<32x32xf32>
      %153 = arith.truncf %152 : vector<32x32xf32> to vector<32x32xbf16>
      %c10 = arith.constant 10 : index
      %c0_78 = arith.constant 0 : index
      %c0_79 = arith.constant 0 : index
      %154 = vector.load %arg11[%c10, %c0_78, %c0_79] : memref<16x32x32xbf16, #tpu.memory_space<vmem>>, vector<1x32x32xbf16>
      %155 = vector.shape_cast %154 : vector<1x32x32xbf16> to vector<32x32xbf16>
      %156 = vector.shape_cast %153 : vector<32x32xbf16> to vector<1x32x32xbf16>
      tpu.vector_store %arg11[%c10, %c0_78, %c0_79], %156 {strides = array<i32>} : memref<16x32x32xbf16, #tpu.memory_space<vmem>>, vector<1x32x32xbf16>,
      %157 = vector.extract_strided_slice %101 {offsets = [0, 352], sizes = [32, 32], strides = [1, 1]} : vector<32x512xf32> to vector<32x32xf32>
      %158 = arith.truncf %157 : vector<32x32xf32> to vector<32x32xbf16>
      %c11 = arith.constant 11 : index
      %c0_80 = arith.constant 0 : index
      %c0_81 = arith.constant 0 : index
      %159 = vector.load %arg11[%c11, %c0_80, %c0_81] : memref<16x32x32xbf16, #tpu.memory_space<vmem>>, vector<1x32x32xbf16>
      %160 = vector.shape_cast %159 : vector<1x32x32xbf16> to vector<32x32xbf16>
      %161 = vector.shape_cast %158 : vector<32x32xbf16> to vector<1x32x32xbf16>
      tpu.vector_store %arg11[%c11, %c0_80, %c0_81], %161 {strides = array<i32>} : memref<16x32x32xbf16, #tpu.memory_space<vmem>>, vector<1x32x32xbf16>,
      %162 = vector.extract_strided_slice %101 {offsets = [0, 384], sizes = [32, 32], strides = [1, 1]} : vector<32x512xf32> to vector<32x32xf32>
      %163 = arith.truncf %162 : vector<32x32xf32> to vector<32x32xbf16>
      %c12 = arith.constant 12 : index
      %c0_82 = arith.constant 0 : index
      %c0_83 = arith.constant 0 : index
      %164 = vector.load %arg11[%c12, %c0_82, %c0_83] : memref<16x32x32xbf16, #tpu.memory_space<vmem>>, vector<1x32x32xbf16>
      %165 = vector.shape_cast %164 : vector<1x32x32xbf16> to vector<32x32xbf16>
      %166 = vector.shape_cast %163 : vector<32x32xbf16> to vector<1x32x32xbf16>
      tpu.vector_store %arg11[%c12, %c0_82, %c0_83], %166 {strides = array<i32>} : memref<16x32x32xbf16, #tpu.memory_space<vmem>>, vector<1x32x32xbf16>,
      %167 = vector.extract_strided_slice %101 {offsets = [0, 416], sizes = [32, 32], strides = [1, 1]} : vector<32x512xf32> to vector<32x32xf32>
      %168 = arith.truncf %167 : vector<32x32xf32> to vector<32x32xbf16>
      %c13 = arith.constant 13 : index
      %c0_84 = arith.constant 0 : index
      %c0_85 = arith.constant 0 : index
      %169 = vector.load %arg11[%c13, %c0_84, %c0_85] : memref<16x32x32xbf16, #tpu.memory_space<vmem>>, vector<1x32x32xbf16>
      %170 = vector.shape_cast %169 : vector<1x32x32xbf16> to vector<32x32xbf16>
      %171 = vector.shape_cast %168 : vector<32x32xbf16> to vector<1x32x32xbf16>
      tpu.vector_store %arg11[%c13, %c0_84, %c0_85], %171 {strides = array<i32>} : memref<16x32x32xbf16, #tpu.memory_space<vmem>>, vector<1x32x32xbf16>,
      %172 = vector.extract_strided_slice %101 {offsets = [0, 448], sizes = [32, 32], strides = [1, 1]} : vector<32x512xf32> to vector<32x32xf32>
      %173 = arith.truncf %172 : vector<32x32xf32> to vector<32x32xbf16>
      %c14 = arith.constant 14 : index
      %c0_86 = arith.constant 0 : index
      %c0_87 = arith.constant 0 : index
      %174 = vector.load %arg11[%c14, %c0_86, %c0_87] : memref<16x32x32xbf16, #tpu.memory_space<vmem>>, vector<1x32x32xbf16>
      %175 = vector.shape_cast %174 : vector<1x32x32xbf16> to vector<32x32xbf16>
      %176 = vector.shape_cast %173 : vector<32x32xbf16> to vector<1x32x32xbf16>
      tpu.vector_store %arg11[%c14, %c0_86, %c0_87], %176 {strides = array<i32>} : memref<16x32x32xbf16, #tpu.memory_space<vmem>>, vector<1x32x32xbf16>,
      %177 = vector.extract_strided_slice %101 {offsets = [0, 480], sizes = [32, 32], strides = [1, 1]} : vector<32x512xf32> to vector<32x32xf32>
      %178 = arith.truncf %177 : vector<32x32xf32> to vector<32x32xbf16>
      %c15 = arith.constant 15 : index
      %c0_88 = arith.constant 0 : index
      %c0_89 = arith.constant 0 : index
      %179 = vector.load %arg11[%c15, %c0_88, %c0_89] : memref<16x32x32xbf16, #tpu.memory_space<vmem>>, vector<1x32x32xbf16>
      %180 = vector.shape_cast %179 : vector<1x32x32xbf16> to vector<32x32xbf16>
      %181 = vector.shape_cast %178 : vector<32x32xbf16> to vector<1x32x32xbf16>
      tpu.vector_store %arg11[%c15, %c0_88, %c0_89], %181 {strides = array<i32>} : memref<16x32x32xbf16, #tpu.memory_space<vmem>>, vector<1x32x32xbf16>,
    } else {
    }
    %c0 = arith.constant 0 : index
    %c0_1 = arith.constant 0 : index
    %c0_2 = arith.constant 0 : index
    %3 = vector.load %arg2[%c0, %c0_1, %c0_2] : memref<1x16x256xf32, #tpu.memory_space<vmem>>, vector<1x16x256xf32>
    %4 = vector.shape_cast %3 : vector<1x16x256xf32> to vector<16x256xf32>
    %5 = arith.truncf %4 : vector<16x256xf32> to vector<16x256xbf16>
    %c0_3 = arith.constant 0 : index
    %c0_4 = arith.constant 0 : index
    %6 = vector.load %arg4[%c0_3, %c0_4] : memref<256x256xbf16, #tpu.memory_space<vmem>>, vector<256x256xbf16>
    %cst = arith.constant dense<0.000000e+00> : vector<16x256xf32>
    %7 = tpu.matmul %5, %6, %cst {dimension_numbers = #tpu.dot_dimension_numbers<[1], [0], [0], [1], [0, 0, 1, 1], [], []>} : vector<16x256xbf16>, vector<256x256xbf16>, vector<16x256xf32> -> vector<16x256xf32>
    %c0_5 = arith.constant 0 : index
    %c0_6 = arith.constant 0 : index
    %8 = vector.load %arg5[%c0_5, %c0_6] : memref<1x256xf32, #tpu.memory_space<vmem>>, vector<1x256xf32>
    %9 = vector.broadcast %8 : vector<1x256xf32> to vector<16x256xf32>
    %10 = arith.addf %7, %9 : vector<16x256xf32>
    %11 = vector.extract_strided_slice %10 {offsets = [0, 0], sizes = [16, 32], strides = [1, 1]} : vector<16x256xf32> to vector<16x32xf32>
    %12 = arith.truncf %11 : vector<16x32xf32> to vector<16x32xbf16>
    %c0_7 = arith.constant 0 : index
    %c0_8 = arith.constant 0 : index
    %c0_9 = arith.constant 0 : index
    %13 = vector.load %arg12[%c0_7, %c0_8, %c0_9] : memref<8x16x32xbf16, #tpu.memory_space<vmem>>, vector<1x16x32xbf16>
    %14 = vector.shape_cast %13 : vector<1x16x32xbf16> to vector<16x32xbf16>
    %15 = vector.shape_cast %12 : vector<16x32xbf16> to vector<1x16x32xbf16>
    tpu.vector_store %arg12[%c0_7, %c0_8, %c0_9], %15 {strides = array<i32>} : memref<8x16x32xbf16, #tpu.memory_space<vmem>>, vector<1x16x32xbf16>,
    %16 = vector.extract_strided_slice %10 {offsets = [0, 32], sizes = [16, 32], strides = [1, 1]} : vector<16x256xf32> to vector<16x32xf32>
    %17 = arith.truncf %16 : vector<16x32xf32> to vector<16x32xbf16>
    %c1 = arith.constant 1 : index
    %c0_10 = arith.constant 0 : index
    %c0_11 = arith.constant 0 : index
    %18 = vector.load %arg12[%c1, %c0_10, %c0_11] : memref<8x16x32xbf16, #tpu.memory_space<vmem>>, vector<1x16x32xbf16>
    %19 = vector.shape_cast %18 : vector<1x16x32xbf16> to vector<16x32xbf16>
    %20 = vector.shape_cast %17 : vector<16x32xbf16> to vector<1x16x32xbf16>
    tpu.vector_store %arg12[%c1, %c0_10, %c0_11], %20 {strides = array<i32>} : memref<8x16x32xbf16, #tpu.memory_space<vmem>>, vector<1x16x32xbf16>,
    %21 = vector.extract_strided_slice %10 {offsets = [0, 64], sizes = [16, 32], strides = [1, 1]} : vector<16x256xf32> to vector<16x32xf32>
    %22 = arith.truncf %21 : vector<16x32xf32> to vector<16x32xbf16>
    %c2 = arith.constant 2 : index
    %c0_12 = arith.constant 0 : index
    %c0_13 = arith.constant 0 : index
    %23 = vector.load %arg12[%c2, %c0_12, %c0_13] : memref<8x16x32xbf16, #tpu.memory_space<vmem>>, vector<1x16x32xbf16>
    %24 = vector.shape_cast %23 : vector<1x16x32xbf16> to vector<16x32xbf16>
    %25 = vector.shape_cast %22 : vector<16x32xbf16> to vector<1x16x32xbf16>
    tpu.vector_store %arg12[%c2, %c0_12, %c0_13], %25 {strides = array<i32>} : memref<8x16x32xbf16, #tpu.memory_space<vmem>>, vector<1x16x32xbf16>,
    %26 = vector.extract_strided_slice %10 {offsets = [0, 96], sizes = [16, 32], strides = [1, 1]} : vector<16x256xf32> to vector<16x32xf32>
    %27 = arith.truncf %26 : vector<16x32xf32> to vector<16x32xbf16>
    %c3 = arith.constant 3 : index
    %c0_14 = arith.constant 0 : index
    %c0_15 = arith.constant 0 : index
    %28 = vector.load %arg12[%c3, %c0_14, %c0_15] : memref<8x16x32xbf16, #tpu.memory_space<vmem>>, vector<1x16x32xbf16>
    %29 = vector.shape_cast %28 : vector<1x16x32xbf16> to vector<16x32xbf16>
    %30 = vector.shape_cast %27 : vector<16x32xbf16> to vector<1x16x32xbf16>
    tpu.vector_store %arg12[%c3, %c0_14, %c0_15], %30 {strides = array<i32>} : memref<8x16x32xbf16, #tpu.memory_space<vmem>>, vector<1x16x32xbf16>,
    %31 = vector.extract_strided_slice %10 {offsets = [0, 128], sizes = [16, 32], strides = [1, 1]} : vector<16x256xf32> to vector<16x32xf32>
    %32 = arith.truncf %31 : vector<16x32xf32> to vector<16x32xbf16>
    %c4 = arith.constant 4 : index
    %c0_16 = arith.constant 0 : index
    %c0_17 = arith.constant 0 : index
    %33 = vector.load %arg12[%c4, %c0_16, %c0_17] : memref<8x16x32xbf16, #tpu.memory_space<vmem>>, vector<1x16x32xbf16>
    %34 = vector.shape_cast %33 : vector<1x16x32xbf16> to vector<16x32xbf16>
    %35 = vector.shape_cast %32 : vector<16x32xbf16> to vector<1x16x32xbf16>
    tpu.vector_store %arg12[%c4, %c0_16, %c0_17], %35 {strides = array<i32>} : memref<8x16x32xbf16, #tpu.memory_space<vmem>>, vector<1x16x32xbf16>,
    %36 = vector.extract_strided_slice %10 {offsets = [0, 160], sizes = [16, 32], strides = [1, 1]} : vector<16x256xf32> to vector<16x32xf32>
    %37 = arith.truncf %36 : vector<16x32xf32> to vector<16x32xbf16>
    %c5 = arith.constant 5 : index
    %c0_18 = arith.constant 0 : index
    %c0_19 = arith.constant 0 : index
    %38 = vector.load %arg12[%c5, %c0_18, %c0_19] : memref<8x16x32xbf16, #tpu.memory_space<vmem>>, vector<1x16x32xbf16>
    %39 = vector.shape_cast %38 : vector<1x16x32xbf16> to vector<16x32xbf16>
    %40 = vector.shape_cast %37 : vector<16x32xbf16> to vector<1x16x32xbf16>
    tpu.vector_store %arg12[%c5, %c0_18, %c0_19], %40 {strides = array<i32>} : memref<8x16x32xbf16, #tpu.memory_space<vmem>>, vector<1x16x32xbf16>,
    %41 = vector.extract_strided_slice %10 {offsets = [0, 192], sizes = [16, 32], strides = [1, 1]} : vector<16x256xf32> to vector<16x32xf32>
    %42 = arith.truncf %41 : vector<16x32xf32> to vector<16x32xbf16>
    %c6 = arith.constant 6 : index
    %c0_20 = arith.constant 0 : index
    %c0_21 = arith.constant 0 : index
    %43 = vector.load %arg12[%c6, %c0_20, %c0_21] : memref<8x16x32xbf16, #tpu.memory_space<vmem>>, vector<1x16x32xbf16>
    %44 = vector.shape_cast %43 : vector<1x16x32xbf16> to vector<16x32xbf16>
    %45 = vector.shape_cast %42 : vector<16x32xbf16> to vector<1x16x32xbf16>
    tpu.vector_store %arg12[%c6, %c0_20, %c0_21], %45 {strides = array<i32>} : memref<8x16x32xbf16, #tpu.memory_space<vmem>>, vector<1x16x32xbf16>,
    %46 = vector.extract_strided_slice %10 {offsets = [0, 224], sizes = [16, 32], strides = [1, 1]} : vector<16x256xf32> to vector<16x32xf32>
    %47 = arith.truncf %46 : vector<16x32xf32> to vector<16x32xbf16>
    %c7 = arith.constant 7 : index
    %c0_22 = arith.constant 0 : index
    %c0_23 = arith.constant 0 : index
    %48 = vector.load %arg12[%c7, %c0_22, %c0_23] : memref<8x16x32xbf16, #tpu.memory_space<vmem>>, vector<1x16x32xbf16>
    %49 = vector.shape_cast %48 : vector<1x16x32xbf16> to vector<16x32xbf16>
    %50 = vector.shape_cast %47 : vector<16x32xbf16> to vector<1x16x32xbf16>
    tpu.vector_store %arg12[%c7, %c0_22, %c0_23], %50 {strides = array<i32>} : memref<8x16x32xbf16, #tpu.memory_space<vmem>>, vector<1x16x32xbf16>,
    %c0_24 = arith.constant 0 : index
    %c0_25 = arith.constant 0 : index
    %c0_26 = arith.constant 0 : index
    %51 = vector.load %arg12[%c0_24, %c0_25, %c0_26] : memref<8x16x32xbf16, #tpu.memory_space<vmem>>, vector<8x16x32xbf16>
    %c0_27 = arith.constant 0 : index
    %c0_28 = arith.constant 0 : index
    %c0_29 = arith.constant 0 : index
    %52 = vector.load %arg11[%c0_27, %c0_28, %c0_29] : memref<16x32x32xbf16, #tpu.memory_space<vmem>>, vector<16x32x32xbf16>
    %53 = vector.extract_strided_slice %52 {offsets = [0, 0, 0], sizes = [8, 32, 32], strides = [1, 1, 1]} : vector<16x32x32xbf16> to vector<8x32x32xbf16>
    %54 = vector.extract_strided_slice %52 {offsets = [8, 0, 0], sizes = [8, 32, 32], strides = [1, 1, 1]} : vector<16x32x32xbf16> to vector<8x32x32xbf16>
    "tpu.trace_start"() <{level = 10 : i32, message = "hqd,hkd->hqk"}> : () -> ()
    %cst_30 = arith.constant dense<0.000000e+00> : vector<8x16x32xf32>
    %55 = tpu.matmul %51, %53, %cst_30 {dimension_numbers = #tpu.dot_dimension_numbers<[2], [2], [1], [1], [0, 0, 0, 1, 1, 1], [0], [0]>} : vector<8x16x32xbf16>, vector<8x32x32xbf16>, vector<8x16x32xf32> -> vector<8x16x32xf32>
    "tpu.trace_stop"() : () -> ()
    %cst_31 = arith.constant dense<0xFF800000> : vector<8x16xf32>
    %56 = vector.multi_reduction <maximumf>, %55, %cst_31 [2] : vector<8x16x32xf32> to vector<8x16xf32>
    %57 = vector.shape_cast %56 : vector<8x16xf32> to vector<8x16x1xf32>
    %58 = vector.broadcast %57 : vector<8x16x1xf32> to vector<8x16x32xf32>
    %59 = arith.subf %55, %58 : vector<8x16x32xf32>
    %60 = math.exp %59 : vector<8x16x32xf32>
    %cst_32 = arith.constant dense<0.000000e+00> : vector<8x16xf32>
    %61 = vector.multi_reduction <add>, %60, %cst_32 [2] : vector<8x16x32xf32> to vector<8x16xf32>
    %62 = vector.shape_cast %61 : vector<8x16xf32> to vector<8x16x1xf32>
    %63 = tpu.reciprocal %62 {approx = true} : vector<8x16x1xf32> -> vector<8x16x1xf32>
    %64 = vector.broadcast %63 : vector<8x16x1xf32> to vector<8x16x32xf32>
    %65 = arith.mulf %60, %64 : vector<8x16x32xf32>
    %66 = arith.truncf %65 : vector<8x16x32xf32> to vector<8x16x32xbf16>
    "tpu.trace_start"() <{level = 10 : i32, message = "hqk,hkd->hqd"}> : () -> ()
    %cst_33 = arith.constant dense<0.000000e+00> : vector<8x16x32xf32>
    %67 = tpu.matmul %66, %54, %cst_33 {dimension_numbers = #tpu.dot_dimension_numbers<[2], [1], [1], [2], [0, 0, 0, 1, 1, 2], [0], [0]>} : vector<8x16x32xbf16>, vector<8x32x32xbf16>, vector<8x16x32xf32> -> vector<8x16x32xf32>
    "tpu.trace_stop"() : () -> ()
    %68 = vector.extract_strided_slice %67 {offsets = [0, 0, 0], sizes = [1, 16, 32], strides = [1, 1, 1]} : vector<8x16x32xf32> to vector<1x16x32xf32>
    %69 = vector.shape_cast %68 : vector<1x16x32xf32> to vector<16x32xf32>
    %70 = vector.extract_strided_slice %67 {offsets = [1, 0, 0], sizes = [1, 16, 32], strides = [1, 1, 1]} : vector<8x16x32xf32> to vector<1x16x32xf32>
    %71 = vector.shape_cast %70 : vector<1x16x32xf32> to vector<16x32xf32>
    %72 = vector.extract_strided_slice %67 {offsets = [2, 0, 0], sizes = [1, 16, 32], strides = [1, 1, 1]} : vector<8x16x32xf32> to vector<1x16x32xf32>
    %73 = vector.shape_cast %72 : vector<1x16x32xf32> to vector<16x32xf32>
    %74 = vector.extract_strided_slice %67 {offsets = [3, 0, 0], sizes = [1, 16, 32], strides = [1, 1, 1]} : vector<8x16x32xf32> to vector<1x16x32xf32>
    %75 = vector.shape_cast %74 : vector<1x16x32xf32> to vector<16x32xf32>
    %76 = vector.extract_strided_slice %67 {offsets = [4, 0, 0], sizes = [1, 16, 32], strides = [1, 1, 1]} : vector<8x16x32xf32> to vector<1x16x32xf32>
    %77 = vector.shape_cast %76 : vector<1x16x32xf32> to vector<16x32xf32>
    %78 = vector.extract_strided_slice %67 {offsets = [5, 0, 0], sizes = [1, 16, 32], strides = [1, 1, 1]} : vector<8x16x32xf32> to vector<1x16x32xf32>
    %79 = vector.shape_cast %78 : vector<1x16x32xf32> to vector<16x32xf32>
    %80 = vector.extract_strided_slice %67 {offsets = [6, 0, 0], sizes = [1, 16, 32], strides = [1, 1, 1]} : vector<8x16x32xf32> to vector<1x16x32xf32>
    %81 = vector.shape_cast %80 : vector<1x16x32xf32> to vector<16x32xf32>
    %82 = vector.extract_strided_slice %67 {offsets = [7, 0, 0], sizes = [1, 16, 32], strides = [1, 1, 1]} : vector<8x16x32xf32> to vector<1x16x32xf32>
    %83 = vector.shape_cast %82 : vector<1x16x32xf32> to vector<16x32xf32>
    %84 = tpu.concatenate %69, %71, %73, %75, %77, %79, %81, %83 in 1 : vector<16x32xf32>, vector<16x32xf32>, vector<16x32xf32>, vector<16x32xf32>, vector<16x32xf32>, vector<16x32xf32>, vector<16x32xf32>, vector<16x32xf32> -> vector<16x256xf32>
    %85 = arith.truncf %84 : vector<16x256xf32> to vector<16x256xbf16>
    %c0_34 = arith.constant 0 : index
    %c0_35 = arith.constant 0 : index
    %86 = vector.load %arg8[%c0_34, %c0_35] : memref<256x256xbf16, #tpu.memory_space<vmem>>, vector<256x256xbf16>
    %cst_36 = arith.constant dense<0.000000e+00> : vector<16x256xf32>
    %87 = tpu.matmul %85, %86, %cst_36 {dimension_numbers = #tpu.dot_dimension_numbers<[1], [0], [0], [1], [0, 0, 1, 1], [], []>} : vector<16x256xbf16>, vector<256x256xbf16>, vector<16x256xf32> -> vector<16x256xf32>
    %c0_37 = arith.constant 0 : index
    %c0_38 = arith.constant 0 : index
    %88 = vector.load %arg9[%c0_37, %c0_38] : memref<1x256xf32, #tpu.memory_space<vmem>>, vector<1x256xf32>
    %89 = vector.broadcast %88 : vector<1x256xf32> to vector<16x256xf32>
    %90 = arith.addf %87, %89 : vector<16x256xf32>
    %c0_39 = arith.constant 0 : index
    %c0_40 = arith.constant 0 : index
    %c0_41 = arith.constant 0 : index
    %91 = vector.load %arg10[%c0_39, %c0_40, %c0_41] : memref<1x16x256xf32, #tpu.memory_space<vmem>>, vector<1x16x256xf32>
    %92 = vector.shape_cast %91 : vector<1x16x256xf32> to vector<16x256xf32>
    %93 = vector.shape_cast %90 : vector<16x256xf32> to vector<1x16x256xf32>
    tpu.vector_store %arg10[%c0_39, %c0_40, %c0_41], %93 {strides = array<i32>} : memref<1x16x256xf32, #tpu.memory_space<vmem>>, vector<1x16x256xf32>,
    return
  }
  func.func @transform_0(%arg0: i32, %arg1: i32) -> (i32, i32, i32) {
    %c0_i32 = arith.constant 0 : i32
    %c0_i32_0 = arith.constant 0 : i32
    return %arg0, %arg1, %c0_i32 : i32, i32, i32
  }
  func.func @transform_1(%arg0: i32, %arg1: i32) -> (i32, i32, i32) {
    %c0_i32 = arith.constant 0 : i32
    %c0_i32_0 = arith.constant 0 : i32
    %c0_i32_1 = arith.constant 0 : i32
    return %arg0, %c0_i32, %c0_i32_0 : i32, i32, i32
  }
  func.func @transform_2(%arg0: i32, %arg1: i32) -> (i32, i32) {
    %c0_i32 = arith.constant 0 : i32
    %c0_i32_0 = arith.constant 0 : i32
    %c0_i32_1 = arith.constant 0 : i32
    return %c0_i32, %c0_i32_0 : i32, i32
  }
  func.func @transform_3(%arg0: i32, %arg1: i32) -> (i32, i32) {
    %c0_i32 = arith.constant 0 : i32
    %c0_i32_0 = arith.constant 0 : i32
    %c0_i32_1 = arith.constant 0 : i32
    return %c0_i32, %c0_i32_0 : i32, i32
  }
  func.func @transform_4(%arg0: i32, %arg1: i32) -> (i32, i32) {
    %c0_i32 = arith.constant 0 : i32
    %c0_i32_0 = arith.constant 0 : i32
    %c0_i32_1 = arith.constant 0 : i32
    return %c0_i32, %c0_i32_0 : i32, i32
  }
  func.func @transform_5(%arg0: i32, %arg1: i32) -> (i32, i32) {
    %c0_i32 = arith.constant 0 : i32
    %c0_i32_0 = arith.constant 0 : i32
    %c0_i32_1 = arith.constant 0 : i32
    return %c0_i32, %c0_i32_0 : i32, i32
  }
  func.func @transform_6(%arg0: i32, %arg1: i32) -> (i32, i32) {
    %c0_i32 = arith.constant 0 : i32
    %c0_i32_0 = arith.constant 0 : i32
    %c0_i32_1 = arith.constant 0 : i32
    return %c0_i32, %c0_i32_0 : i32, i32
  }
  func.func @transform_7(%arg0: i32, %arg1: i32) -> (i32, i32) {
    %c0_i32 = arith.constant 0 : i32
    %c0_i32_0 = arith.constant 0 : i32
    %c0_i32_1 = arith.constant 0 : i32
    return %c0_i32, %c0_i32_0 : i32, i32
  }
  func.func @transform_8(%arg0: i32, %arg1: i32) -> (i32, i32, i32) {
    %c0_i32 = arith.constant 0 : i32
    %c0_i32_0 = arith.constant 0 : i32
    return %arg0, %arg1, %c0_i32 : i32, i32, i32
  }
}

</mosaic_0001>

<llo_original>
// kernel: tpu_custom_call.1
$region0: #{tpu_custom_call.1}
  #allocation0 [shape = 'u32[]', space=smem, size = 0x4, offset = 0x4, fixed_abs, tag = 'smem constant byte address 0x4 - core index']
  #allocation1 [shape = 'u32[144,128]{1,0:T(1,128)}', space=vmem, size = 0x12000, scoped, tag = 'internal scratch']
  #allocation2 [shape = 'bf16[16,32,32]{2,1,0:T(16,128)(2,1)}', space=vmem, size = 0x20000, scoped, tag = 'scratch operand']
  #allocation3 [shape = 'bf16[8,16,32]{2,1,0:T(16,128)(2,1)}', space=vmem, size = 0x8000, scoped, tag = 'scratch operand']
  %s0 = inlined_call_operand.hbm [shape: f32[2,32,256], index: 0, kind: input, shape index: {}]
  %s1 = inlined_call_operand.hbm [shape: f32[2,32,256], index: 1, kind: input, shape index: {}]
  %s2 = inlined_call_operand.hbm [shape: bf16[256,256], index: 2, kind: input, shape index: {}]
  %s3 = inlined_call_operand.vmem [shape: f32[1,256], index: 3, kind: input, shape index: {}]
  %s4 = inlined_call_operand.hbm [shape: bf16[256,512], index: 4, kind: input, shape index: {}]
  %s5 = inlined_call_operand.vmem [shape: f32[1,512], index: 5, kind: input, shape index: {}]
  %s6 = inlined_call_operand.hbm [shape: bf16[256,256], index: 6, kind: input, shape index: {}]
  %s7 = inlined_call_operand.vmem [shape: f32[1,256], index: 7, kind: input, shape index: {}]
  %s8 = inlined_call_operand.hbm [shape: f32[2,32,256], index: 8, kind: output, shape index: {}]
  %s9 = sld [smem:[#allocation0]]
  $region89: #{tpu_custom_call.1} parent=0
    _
  %s11 = ssub.s32 1, %s9
  %s12 = scalar_select 0, %s11, %s9
  $region1: #{tpu_custom_call.1} parent=0
    #allocation4 [shape = 'u8[32768]{0}', space=vmem, size = 0x8000, scoped, tag = 'input window, operand 0']
    #allocation5 [shape = 's32[2]{0}', space=sflag, size = 0x8, scoped, tag = 'scoped memory for tpu_custom_call.1']
    #allocation6 [shape = 's32[2]{0}', space=sflag, size = 0x8, scoped, tag = 'scoped memory for tpu_custom_call.1']
    #allocation7 [shape = 'u8[65536]{0}', space=vmem, size = 0x10000, scoped, tag = 'input window, operand 1']
    #allocation8 [shape = 's32[2]{0}', space=sflag, size = 0x8, scoped, tag = 'scoped memory for tpu_custom_call.1']
    #allocation9 [shape = 'u8[131072]{0}', space=vmem, size = 0x20000, scoped, tag = 'input window, operand 2, single buffered']
    #allocation10 [shape = 'u8[262144]{0}', space=vmem, size = 0x40000, scoped, tag = 'input window, operand 4, single buffered']
    #allocation11 [shape = 's32[1]{0}', space=sflag, size = 0x4, scoped, tag = 'scoped memory for tpu_custom_call.1']
    #allocation12 [shape = 'u8[131072]{0}', space=vmem, size = 0x20000, scoped, tag = 'input window, operand 6, single buffered']
    #allocation13 [shape = 'u8[32768]{0}', space=vmem, size = 0x8000, scoped, tag = 'output window, operand 0']
    %13 = vsyncpa [#allocation5], 0
    %s14 = scalar_lea.sflag [#allocation5], 1
    %15 = vsyncpa %s14, 0
    %16 = vsyncpa [#allocation8], 0
    %s17 = scalar_lea.sflag [#allocation8], 1
    %18 = vsyncpa %s17, 0
    %19 = vsyncpa [#allocation11], 0
    %20 = vsyncpa [#allocation6], 0
    %s21 = scalar_lea.sflag [#allocation6], 1
    %22 = vsyncpa %s21, 0
    loop: start=0, step=1, limit=6
    $region2: #{tpu_custom_call.1} parent=1 // loop_pre_header
      _
    $region3: #{tpu_custom_call.1} parent=1 // loop_header
      %s24 = sphi 0, %s28
      %p25 = scmp.ge.s32.totalorder %s24, 6
      %s31 = sphi 0, %s43
      %s32 = sphi 0, %s39
      %s33 = sphi 0, %s31
      %s34 = sphi 0, %s32
      %s35 = sphi 0, %s33
      %s36 = sphi 0, %s34
      %s48 = sphi 0, %s50
      %s51 = sphi 0, %s48
      %s52 = sphi 0, %s51
      %s68 = sphi 0, %s52
      %s74 = sphi 0, %s76
      %s77 = sphi 0, %s74
      %s78 = sphi 0, %s77
      %s94 = sphi 0, %s78
      %s98 = sphi 0, %s98
      %s100 = sphi 0, %s98
      %s101 = sphi 0, %s100
      %s115 = sphi 0, %s101
      %s119 = sphi 0, %s119
      %s121 = sphi 0, %s119
      %s122 = sphi 0, %s121
      %s136 = sphi 0, %s122
      %s140 = sphi 0, %s140
      %s142 = sphi 0, %s140
      %s143 = sphi 0, %s142
      %s157 = sphi 0, %s143
      %s161 = sphi 0, %s161
      %s163 = sphi 0, %s161
      %s164 = sphi 0, %s163
      %s178 = sphi 0, %s164
      %s182 = sphi 0, %s182
      %s184 = sphi 0, %s182
      %s185 = sphi 0, %s184
      %s199 = sphi 0, %s185
      %s203 = sphi 0, %s203
      %s205 = sphi 0, %s203
      %s206 = sphi 0, %s205
      %s220 = sphi 0, %s206
      %s228 = sphi 0, %s230
      %s231 = sphi 0, %s228
      %s232 = sphi 0, %s231
      %s248 = sphi 0, %s232
    $region4: #{tpu_custom_call.1} parent=1 // loop_header_branch
      %27 = sbr.rel (%p25) target = $region8
    $region5: #{tpu_custom_call.1} parent=1 // loop_body
      %s29 = ssub.s32 %s24, 1
      %s30 = ssub.s32 %s24, 2
      %s37 = sadd.s32 1, %s32
      %p38 = scmp.ge.s32.totalorder %s37, 2
      %s39 = scalar_select %p38, 0, %s37
      %s40 = sadd.s32 1, %s31
      %s41 = scalar_select %p38, %s40, %s31
      %p42 = scmp.ge.s32.totalorder %s41, 2
      %s43 = scalar_select %p42, 0, %s41
      %s44 = ssub.s32 %s31, %s43
      %s45 = ssub.s32 %s32, %s39
      %s46 = sor.u32 %s44, %s45
      %p47 = scmp.eq.s32.totalorder %s46, 0
      %s49 = sadd.s32 %s48, 1
      %s50 = scalar_select %p47, %s48, %s49
      %p53 = pneg %p47
      %p54 = scmp.eq.s32.totalorder %s24, 3
      %p55 = por %p53, %p54
      %p56 = scmp.ne.s32.totalorder %s48, %s51
      %p57 = scmp.eq.s32.totalorder %s24, 0
      %p58 = por %p56, %p57
      %p59 = scmp.ne.s32.totalorder %s48, %s51
      %p60 = scmp.eq.s32.totalorder %s29, 3
      %p61 = por %p59, %p60
      %p62 = scmp.ne.s32.totalorder %s51, %s52
      %p63 = scmp.eq.s32.totalorder %s29, 0
      %p64 = por %p62, %p63
      %p65 = scmp.ne.s32.totalorder %s51, %s52
      %p66 = scmp.eq.s32.totalorder %s30, 3
      %p67 = por %p65, %p66
      %p69 = scmp.ne.s32.totalorder %s52, %s68
      %p70 = scmp.eq.s32.totalorder %s30, 0
      %p71 = por %p69, %p70
      %s72 = ssub.s32 %s31, %s43
      %p73 = scmp.eq.s32.totalorder %s72, 0
      %s75 = sadd.s32 %s74, 1
      %s76 = scalar_select %p73, %s74, %s75
      %p79 = pneg %p73
      %p80 = scmp.eq.s32.totalorder %s24, 3
      %p81 = por %p79, %p80
      %p82 = scmp.ne.s32.totalorder %s74, %s77
      %p83 = scmp.eq.s32.totalorder %s24, 0
      %p84 = por %p82, %p83
      %p85 = scmp.ne.s32.totalorder %s74, %s77
      %p86 = scmp.eq.s32.totalorder %s29, 3
      %p87 = por %p85, %p86
      %p88 = scmp.ne.s32.totalorder %s77, %s78
      %p89 = scmp.eq.s32.totalorder %s29, 0
      %p90 = por %p88, %p89
      %p91 = scmp.ne.s32.totalorder %s77, %s78
      %p92 = scmp.eq.s32.totalorder %s30, 3
      %p93 = por %p91, %p92
      %p95 = scmp.ne.s32.totalorder %s78, %s94
      %p96 = scmp.eq.s32.totalorder %s30, 0
      %p97 = por %p95, %p96
      %s99 = sadd.s32 %s98, 1
      %p102 = scmp.eq.s32.totalorder %s24, 3
      %p103 = scmp.ne.s32.totalorder %s98, %s100
      %p104 = scmp.eq.s32.totalorder %s24, 0
      %p105 = por %p103, %p104
      %p106 = scmp.ne.s32.totalorder %s98, %s100
      %p107 = scmp.eq.s32.totalorder %s29, 3
      %p108 = por %p106, %p107
      %p109 = scmp.ne.s32.totalorder %s100, %s101
      %p110 = scmp.eq.s32.totalorder %s29, 0
      %p111 = por %p109, %p110
      %p112 = scmp.ne.s32.totalorder %s100, %s101
      %p113 = scmp.eq.s32.totalorder %s30, 3
      %p114 = por %p112, %p113
      %p116 = scmp.ne.s32.totalorder %s101, %s115
      %p117 = scmp.eq.s32.totalorder %s30, 0
      %p118 = por %p116, %p117
      %s120 = sadd.s32 %s119, 1
      %p123 = scmp.eq.s32.totalorder %s24, 3
      %p124 = scmp.ne.s32.totalorder %s119, %s121
      %p125 = scmp.eq.s32.totalorder %s24, 0
      %p126 = por %p124, %p125
      %p127 = scmp.ne.s32.totalorder %s119, %s121
      %p128 = scmp.eq.s32.totalorder %s29, 3
      %p129 = por %p127, %p128
      %p130 = scmp.ne.s32.totalorder %s121, %s122
      %p131 = scmp.eq.s32.totalorder %s29, 0
      %p132 = por %p130, %p131
      %p133 = scmp.ne.s32.totalorder %s121, %s122
      %p134 = scmp.eq.s32.totalorder %s30, 3
      %p135 = por %p133, %p134
      %p137 = scmp.ne.s32.totalorder %s122, %s136
      %p138 = scmp.eq.s32.totalorder %s30, 0
      %p139 = por %p137, %p138
      %s141 = sadd.s32 %s140, 1
      %p144 = scmp.eq.s32.totalorder %s24, 3
      %p145 = scmp.ne.s32.totalorder %s140, %s142
      %p146 = scmp.eq.s32.totalorder %s24, 0
      %p147 = por %p145, %p146
      %p148 = scmp.ne.s32.totalorder %s140, %s142
      %p149 = scmp.eq.s32.totalorder %s29, 3
      %p150 = por %p148, %p149
      %p151 = scmp.ne.s32.totalorder %s142, %s143
      %p152 = scmp.eq.s32.totalorder %s29, 0
      %p153 = por %p151, %p152
      %p154 = scmp.ne.s32.totalorder %s142, %s143
      %p155 = scmp.eq.s32.totalorder %s30, 3
      %p156 = por %p154, %p155
      %p158 = scmp.ne.s32.totalorder %s143, %s157
      %p159 = scmp.eq.s32.totalorder %s30, 0
      %p160 = por %p158, %p159
      %s162 = sadd.s32 %s161, 1
      %p165 = scmp.eq.s32.totalorder %s24, 3
      %p166 = scmp.ne.s32.totalorder %s161, %s163
      %p167 = scmp.eq.s32.totalorder %s24, 0
      %p168 = por %p166, %p167
      %p169 = scmp.ne.s32.totalorder %s161, %s163
      %p170 = scmp.eq.s32.totalorder %s29, 3
      %p171 = por %p169, %p170
      %p172 = scmp.ne.s32.totalorder %s163, %s164
      %p173 = scmp.eq.s32.totalorder %s29, 0
      %p174 = por %p172, %p173
      %p175 = scmp.ne.s32.totalorder %s163, %s164
      %p176 = scmp.eq.s32.totalorder %s30, 3
      %p177 = por %p175, %p176
      %p179 = scmp.ne.s32.totalorder %s164, %s178
      %p180 = scmp.eq.s32.totalorder %s30, 0
      %p181 = por %p179, %p180
      %s183 = sadd.s32 %s182, 1
      %p186 = scmp.eq.s32.totalorder %s24, 3
      %p187 = scmp.ne.s32.totalorder %s182, %s184
      %p188 = scmp.eq.s32.totalorder %s24, 0
      %p189 = por %p187, %p188
      %p190 = scmp.ne.s32.totalorder %s182, %s184
      %p191 = scmp.eq.s32.totalorder %s29, 3
      %p192 = por %p190, %p191
      %p193 = scmp.ne.s32.totalorder %s184, %s185
      %p194 = scmp.eq.s32.totalorder %s29, 0
      %p195 = por %p193, %p194
      %p196 = scmp.ne.s32.totalorder %s184, %s185
      %p197 = scmp.eq.s32.totalorder %s30, 3
      %p198 = por %p196, %p197
      %p200 = scmp.ne.s32.totalorder %s185, %s199
      %p201 = scmp.eq.s32.totalorder %s30, 0
      %p202 = por %p200, %p201
      %s204 = sadd.s32 %s203, 1
      %p207 = scmp.eq.s32.totalorder %s24, 3
      %p208 = scmp.ne.s32.totalorder %s203, %s205
      %p209 = scmp.eq.s32.totalorder %s24, 0
      %p210 = por %p208, %p209
      %p211 = scmp.ne.s32.totalorder %s203, %s205
      %p212 = scmp.eq.s32.totalorder %s29, 3
      %p213 = por %p211, %p212
      %p214 = scmp.ne.s32.totalorder %s205, %s206
      %p215 = scmp.eq.s32.totalorder %s29, 0
      %p216 = por %p214, %p215
      %p217 = scmp.ne.s32.totalorder %s205, %s206
      %p218 = scmp.eq.s32.totalorder %s30, 3
      %p219 = por %p217, %p218
      %p221 = scmp.ne.s32.totalorder %s206, %s220
      %p222 = scmp.eq.s32.totalorder %s30, 0
      %p223 = por %p221, %p222
      %s224 = ssub.s32 %s31, %s43
      %s225 = ssub.s32 %s32, %s39
      %s226 = sor.u32 %s224, %s225
      %p227 = scmp.eq.s32.totalorder %s226, 0
      %s229 = sadd.s32 %s228, 1
      %s230 = scalar_select %p227, %s228, %s229
      %p233 = pneg %p227
      %p234 = scmp.eq.s32.totalorder %s24, 3
      %p235 = por %p233, %p234
      %p236 = scmp.ne.s32.totalorder %s228, %s231
      %p237 = scmp.eq.s32.totalorder %s24, 0
      %p238 = por %p236, %p237
      %p239 = scmp.ne.s32.totalorder %s228, %s231
      %p240 = scmp.eq.s32.totalorder %s29, 3
      %p241 = por %p239, %p240
      %p242 = scmp.ne.s32.totalorder %s231, %s232
      %p243 = scmp.eq.s32.totalorder %s29, 0
      %p244 = por %p242, %p243
      %p245 = scmp.ne.s32.totalorder %s231, %s232
      %p246 = scmp.eq.s32.totalorder %s30, 3
      %p247 = por %p245, %p246
      %p249 = scmp.ne.s32.totalorder %s232, %s248
      %p250 = scmp.eq.s32.totalorder %s30, 0
      %p251 = por %p249, %p250
      %p252 = scmp.le.s32.totalorder 1, %s24
      %p253 = scmp.lt.s32.totalorder %s24, 5
      %p254 = pnand %p252, %p253
      %p255 = pneg %p254
      // Predicated region
      $region9: #{tpu_custom_call.1} parent=5 // pred_check
        _
      $region10: #{tpu_custom_call.1} parent=5 // pred_check_branch
        %257 = sbr.rel (%p254) target = $region12
      $region11: #{tpu_custom_call.1} parent=5 // pred_region
        %s258 = ssub.s32 %s24, 1
        // Predicated region
        $region13: #{tpu_custom_call.1} parent=11 // pred_check
          %p259 = pneg %p111
        $region14: #{tpu_custom_call.1} parent=11 // pred_check_branch
          %261 = sbr.rel (%p259) target = $region16
        $region15: #{tpu_custom_call.1} parent=11 // pred_region
          %s263 = ssub.s32 4096, 4096
          %264 = vsyncadd [#allocation8], %s263
          %s265 = sshll.u32 [#allocation9], 4
          %s266 = int_to_ptr.vmem [resolvable:$true] %s265
          %271 = dma.hbm_to_vmem [thread:$0]  %s2, 4096, %s266, [#allocation8], 128, 128, 8
        $region16: #{tpu_custom_call.1} parent=11 // pred_fallthru
          _
        // Predicated region
        $region17: #{tpu_custom_call.1} parent=11 // pred_check
          %p272 = pneg %p132
        $region18: #{tpu_custom_call.1} parent=11 // pred_check_branch
          %274 = sbr.rel (%p272) target = $region20
        $region19: #{tpu_custom_call.1} parent=11 // pred_region
          _
        $region20: #{tpu_custom_call.1} parent=11 // pred_fallthru
          _
        // Predicated region
        $region21: #{tpu_custom_call.1} parent=11 // pred_check
          %p275 = pneg %p153
        $region22: #{tpu_custom_call.1} parent=11 // pred_check_branch
          %277 = sbr.rel (%p275) target = $region24
        $region23: #{tpu_custom_call.1} parent=11 // pred_region
          %s279 = ssub.s32 8192, 8192
          %280 = vsyncadd [#allocation11], %s279
          %s281 = sshll.u32 [#allocation10], 4
          %s282 = int_to_ptr.vmem [resolvable:$true] %s281
          %287 = dma.hbm_to_vmem [thread:$0]  %s4, 8192, %s282, [#allocation11], 256, 256, 16
        $region24: #{tpu_custom_call.1} parent=11 // pred_fallthru
          _
        // Predicated region
        $region25: #{tpu_custom_call.1} parent=11 // pred_check
          %p288 = pneg %p174
        $region26: #{tpu_custom_call.1} parent=11 // pred_check_branch
          %290 = sbr.rel (%p288) target = $region28
        $region27: #{tpu_custom_call.1} parent=11 // pred_region
          _
        $region28: #{tpu_custom_call.1} parent=11 // pred_fallthru
          _
        // Predicated region
        $region29: #{tpu_custom_call.1} parent=11 // pred_check
          %p291 = pneg %p195
        $region30: #{tpu_custom_call.1} parent=11 // pred_check_branch
          %293 = sbr.rel (%p291) target = $region32
        $region31: #{tpu_custom_call.1} parent=11 // pred_region
          %s295 = ssub.s32 4096, 4096
          %296 = vsyncadd [#allocation11], %s295
          %s297 = sshll.u32 [#allocation12], 4
          %s298 = int_to_ptr.vmem [resolvable:$true] %s297
          %303 = dma.hbm_to_vmem [thread:$0]  %s6, 4096, %s298, [#allocation11], 128, 128, 8
        $region32: #{tpu_custom_call.1} parent=11 // pred_fallthru
          _
        // Predicated region
        $region33: #{tpu_custom_call.1} parent=11 // pred_check
          %p304 = pneg %p216
        $region34: #{tpu_custom_call.1} parent=11 // pred_check_branch
          %306 = sbr.rel (%p304) target = $region36
        $region35: #{tpu_custom_call.1} parent=11 // pred_region
          _
        $region36: #{tpu_custom_call.1} parent=11 // pred_fallthru
          _
      $region12: #{tpu_custom_call.1} parent=5 // pred_fallthru
        _
      %p307 = scmp.lt.s32.totalorder %s24, 4
      // Predicated region
      $region37: #{tpu_custom_call.1} parent=5 // pred_check
        %p308 = pneg %p307
      $region38: #{tpu_custom_call.1} parent=5 // pred_check_branch
        %310 = sbr.rel (%p308) target = $region40
      $region39: #{tpu_custom_call.1} parent=5 // pred_region
        // Predicated region
        $region41: #{tpu_custom_call.1} parent=39 // pred_check
          %p311 = pneg %p58
        $region42: #{tpu_custom_call.1} parent=39 // pred_check_branch
          %313 = sbr.rel (%p311) target = $region44
        $region43: #{tpu_custom_call.1} parent=39 // pred_region
          %s314 = sand.u32 %s48, 1
          %s315 = scalar_lea.sflag [#allocation5], %s314
          %s316 = sand.u32 %s48, 1
          %s317 = smul.addr %s316, 32
          %s318 = scalar_lea.vmem [#allocation4], %s317
          %s319 = smul.u32 2, %s32
          %s321 = ssub.s32 512, 512
          %322 = vsyncadd %s315, %s321
          %s323 = smul.addr %s319, 2
          %s324 = smul.addr %s31, 8
          %s325 = sadd.s32 %s323, %s324
          %s326 = smul.addr %s325, 128
          %s327 = scalar_lea.hbm %s0, %s326
          %s328 = sshll.u32 %s318, 4
          %s329 = int_to_ptr.vmem [resolvable:$true] %s328
          %334 = dma.hbm_to_vmem [thread:$0]  %s327, 512, %s329, %s315, 256, 256, 16
        $region44: #{tpu_custom_call.1} parent=39 // pred_fallthru
          _
        // Predicated region
        $region45: #{tpu_custom_call.1} parent=39 // pred_check
          %p335 = pneg %p84
        $region46: #{tpu_custom_call.1} parent=39 // pred_check_branch
          %337 = sbr.rel (%p335) target = $region48
        $region47: #{tpu_custom_call.1} parent=39 // pred_region
          %s338 = sand.u32 %s24, 1
          %s339 = scalar_lea.sflag [#allocation8], %s338
          %s340 = sand.u32 %s74, 1
          %s341 = smul.addr %s340, 64
          %s342 = scalar_lea.vmem [#allocation7], %s341
          %s344 = ssub.s32 1024, 1024
          %345 = vsyncadd %s339, %s344
          %s346 = smul.addr %s31, 8
          %s347 = smul.addr %s346, 128
          %s348 = scalar_lea.hbm %s1, %s347
          %s349 = sshll.u32 %s342, 4
          %s350 = int_to_ptr.vmem [resolvable:$true] %s349
          %355 = dma.hbm_to_vmem [thread:$0]  %s348, 1024, %s350, %s339, 256, 256, 16
        $region48: #{tpu_custom_call.1} parent=39 // pred_fallthru
          _
      $region40: #{tpu_custom_call.1} parent=5 // pred_fallthru
        _
      %p356 = scmp.le.s32.totalorder 1, %s24
      %p357 = scmp.lt.s32.totalorder %s24, 5
      %p358 = pnand %p356, %p357
      %p359 = pneg %p358
      // Predicated region
      $region49: #{tpu_custom_call.1} parent=5 // pred_check
        _
      $region50: #{tpu_custom_call.1} parent=5 // pred_check_branch
        %361 = sbr.rel (%p358) target = $region52
      $region51: #{tpu_custom_call.1} parent=5 // pred_region
        %s362 = ssub.s32 %s24, 1
        %s363 = sand.u32 %s51, 1
        %s364 = scalar_lea.sflag [#allocation5], %s363
        %s365 = sand.u32 %s51, 1
        %s366 = smul.addr %s365, 32
        %s367 = scalar_lea.vmem [#allocation4], %s366
        // Predicated region
        $region53: #{tpu_custom_call.1} parent=51 // pred_check
          %p368 = pneg %p64
        $region54: #{tpu_custom_call.1} parent=51 // pred_check_branch
          %370 = sbr.rel (%p368) target = $region56
        $region55: #{tpu_custom_call.1} parent=51 // pred_region
          %371 = dma.done %s364, 512
        $region56: #{tpu_custom_call.1} parent=51 // pred_fallthru
          _
        %s372 = sand.u32 %s29, 1
        %s373 = scalar_lea.sflag [#allocation8], %s372
        %s374 = sand.u32 %s77, 1
        %s375 = smul.addr %s374, 64
        %s376 = scalar_lea.vmem [#allocation7], %s375
        // Predicated region
        $region57: #{tpu_custom_call.1} parent=51 // pred_check
          %p377 = pneg %p90
        $region58: #{tpu_custom_call.1} parent=51 // pred_check_branch
          %379 = sbr.rel (%p377) target = $region60
        $region59: #{tpu_custom_call.1} parent=51 // pred_region
          %380 = dma.done %s373, 1024
        $region60: #{tpu_custom_call.1} parent=51 // pred_fallthru
          _
        // Predicated region
        $region61: #{tpu_custom_call.1} parent=51 // pred_check
          %p381 = pneg %p111
        $region62: #{tpu_custom_call.1} parent=51 // pred_check_branch
          %383 = sbr.rel (%p381) target = $region64
        $region63: #{tpu_custom_call.1} parent=51 // pred_region
          %384 = dma.done [#allocation8], 4096
        $region64: #{tpu_custom_call.1} parent=51 // pred_fallthru
          _
        // Predicated region
        $region65: #{tpu_custom_call.1} parent=51 // pred_check
          %p385 = pneg %p153
        $region66: #{tpu_custom_call.1} parent=51 // pred_check_branch
          %387 = sbr.rel (%p385) target = $region68
        $region67: #{tpu_custom_call.1} parent=51 // pred_region
          %388 = dma.done [#allocation11], 8192
        $region68: #{tpu_custom_call.1} parent=51 // pred_fallthru
          _
        // Predicated region
        $region69: #{tpu_custom_call.1} parent=51 // pred_check
          %p389 = pneg %p195
        $region70: #{tpu_custom_call.1} parent=51 // pred_check_branch
          %391 = sbr.rel (%p389) target = $region72
        $region71: #{tpu_custom_call.1} parent=51 // pred_region
          %392 = dma.done [#allocation11], 4096
        $region72: #{tpu_custom_call.1} parent=51 // pred_fallthru
          _
        %s393 = sand.u32 %s51, 1
        %s394 = scalar_lea.sflag [#allocation5], %s393
        %s395 = sand.u32 %s51, 1
        %s396 = smul.addr %s395, 32
        %s397 = scalar_lea.vmem [#allocation4], %s396
        %p398 = pneg %p64
        %p399 = pneg %p61
        %s400 = sand.u32 %s29, 1
        %s401 = scalar_lea.sflag [#allocation8], %s400
        %s402 = sand.u32 %s77, 1
        %s403 = smul.addr %s402, 64
        %s404 = scalar_lea.vmem [#allocation7], %s403
        %p405 = pneg %p90
        %p406 = pneg %p87
        %p407 = pneg %p111
        %p408 = pneg %p108
        %p409 = pneg %p132
        %p410 = pneg %p129
        %p411 = pneg %p153
        %p412 = pneg %p150
        %p413 = pneg %p174
        %p414 = pneg %p171
        %p415 = pneg %p195
        %p416 = pneg %p192
        %p417 = pneg %p216
        %p418 = pneg %p213
        %p419 = pneg %p244
        %p420 = pneg %p241
        %s421 = sand.u32 %s231, 1
        %s422 = scalar_lea.sflag [#allocation6], %s421
        %s423 = sand.u32 %s231, 1
        %s424 = smul.addr %s423, 32
        %s425 = scalar_lea.vmem [#allocation13], %s424
        %s426 = smul.u32 2, %s34
        %s427 = smul.u32 2, %s34
        %p429 = scmp.eq.s32.totalorder %s34, 0
        // Predicated region
        $region73: #{tpu_custom_call.1} parent=51 // pred_check
          %p430 = pneg %p429
        $region74: #{tpu_custom_call.1} parent=51 // pred_check_branch
          %432 = sbr.rel (%p430) target = $region76
        $region75: #{tpu_custom_call.1} parent=51 // pred_region
          %v433 = vld [vmem:[%s376] sm:$0xff]
          %v434 = vld [vmem:[%s376 + $0x8] sm:$0xff]
          %v435 = vld [vmem:[%s376 + $0x10] sm:$0xff]
          %v436 = vld [vmem:[%s376 + $0x18] sm:$0xff]
          %v437 = vld [vmem:[%s376 + $0x20] sm:$0xff]
          %v438 = vld [vmem:[%s376 + $0x28] sm:$0xff]
          %v439 = vld [vmem:[%s376 + $0x30] sm:$0xff]
          %v440 = vld [vmem:[%s376 + $0x38] sm:$0xff]
          %v441 = vpack.c.bf16 %v435, %v433
          %v442 = vpack.c.bf16 %v436, %v434
          %v443 = vpack.c.bf16 %v439, %v437
          %v444 = vpack.c.bf16 %v440, %v438
          %v445 = vld [vmem:[#allocation10] sm:$0xff]
          %v446 = vld [vmem:[#allocation10 + $0x8] sm:$0xff]
          %v447 = vld [vmem:[#allocation10 + $0x10] sm:$0xff]
          %v448 = vld [vmem:[#allocation10 + $0x18] sm:$0xff]
          %v449 = vld [vmem:[#allocation10 + $0x20] sm:$0xff]
          %v450 = vld [vmem:[#allocation10 + $0x28] sm:$0xff]
          %v451 = vld [vmem:[#allocation10 + $0x30] sm:$0xff]
          %v452 = vld [vmem:[#allocation10 + $0x38] sm:$0xff]
          %v453 = vld [vmem:[#allocation10 + $0x40] sm:$0xff]
          %v454 = vld [vmem:[#allocation10 + $0x48] sm:$0xff]
          %v455 = vld [vmem:[#allocation10 + $0x50] sm:$0xff]
          %v456 = vld [vmem:[#allocation10 + $0x58] sm:$0xff]
          %v457 = vld [vmem:[#allocation10 + $0x60] sm:$0xff]
          %v458 = vld [vmem:[#allocation10 + $0x68] sm:$0xff]
          %v459 = vld [vmem:[#allocation10 + $0x70] sm:$0xff]
          %v460 = vld [vmem:[#allocation10 + $0x78] sm:$0xff]
          %v461 = vld [vmem:[#allocation10 + $0x80] sm:$0xff]
          %v462 = vld [vmem:[#allocation10 + $0x88] sm:$0xff]
          %v463 = vld [vmem:[#allocation10 + $0x90] sm:$0xff]
          %v464 = vld [vmem:[#allocation10 + $0x98] sm:$0xff]
          %v465 = vld [vmem:[#allocation10 + $0xa0] sm:$0xff]
          %v466 = vld [vmem:[#allocation10 + $0xa8] sm:$0xff]
          %v467 = vld [vmem:[#allocation10 + $0xb0] sm:$0xff]
          %v468 = vld [vmem:[#allocation10 + $0xb8] sm:$0xff]
          %v469 = vld [vmem:[#allocation10 + $0xc0] sm:$0xff]
          %v470 = vld [vmem:[#allocation10 + $0xc8] sm:$0xff]
          %v471 = vld [vmem:[#allocation10 + $0xd0] sm:$0xff]
          %v472 = vld [vmem:[#allocation10 + $0xd8] sm:$0xff]
          %v473 = vld [vmem:[#allocation10 + $0xe0] sm:$0xff]
          %v474 = vld [vmem:[#allocation10 + $0xe8] sm:$0xff]
          %v475 = vld [vmem:[#allocation10 + $0xf0] sm:$0xff]
          %v476 = vld [vmem:[#allocation10 + $0xf8] sm:$0xff]
          %v477 = vld [vmem:[#allocation10 + $0x100] sm:$0xff]
          %v478 = vld [vmem:[#allocation10 + $0x108] sm:$0xff]
          %v479 = vld [vmem:[#allocation10 + $0x110] sm:$0xff]
          %v480 = vld [vmem:[#allocation10 + $0x118] sm:$0xff]
          %v481 = vld [vmem:[#allocation10 + $0x120] sm:$0xff]
          %v482 = vld [vmem:[#allocation10 + $0x128] sm:$0xff]
          %v483 = vld [vmem:[#allocation10 + $0x130] sm:$0xff]
          %v484 = vld [vmem:[#allocation10 + $0x138] sm:$0xff]
          %v485 = vld [vmem:[#allocation10 + $0x140] sm:$0xff]
          %v486 = vld [vmem:[#allocation10 + $0x148] sm:$0xff]
          %v487 = vld [vmem:[#allocation10 + $0x150] sm:$0xff]
          %v488 = vld [vmem:[#allocation10 + $0x158] sm:$0xff]
          %v489 = vld [vmem:[#allocation10 + $0x160] sm:$0xff]
          %v490 = vld [vmem:[#allocation10 + $0x168] sm:$0xff]
          %v491 = vld [vmem:[#allocation10 + $0x170] sm:$0xff]
          %v492 = vld [vmem:[#allocation10 + $0x178] sm:$0xff]
          %v493 = vld [vmem:[#allocation10 + $0x180] sm:$0xff]
          %v494 = vld [vmem:[#allocation10 + $0x188] sm:$0xff]
          %v495 = vld [vmem:[#allocation10 + $0x190] sm:$0xff]
          %v496 = vld [vmem:[#allocation10 + $0x198] sm:$0xff]
          %v497 = vld [vmem:[#allocation10 + $0x1a0] sm:$0xff]
          %v498 = vld [vmem:[#allocation10 + $0x1a8] sm:$0xff]
          %v499 = vld [vmem:[#allocation10 + $0x1b0] sm:$0xff]
          %v500 = vld [vmem:[#allocation10 + $0x1b8] sm:$0xff]
          %v501 = vld [vmem:[#allocation10 + $0x1c0] sm:$0xff]
          %v502 = vld [vmem:[#allocation10 + $0x1c8] sm:$0xff]
          %v503 = vld [vmem:[#allocation10 + $0x1d0] sm:$0xff]
          %v504 = vld [vmem:[#allocation10 + $0x1d8] sm:$0xff]
          %v505 = vld [vmem:[#allocation10 + $0x1e0] sm:$0xff]
          %v506 = vld [vmem:[#allocation10 + $0x1e8] sm:$0xff]
          %v507 = vld [vmem:[#allocation10 + $0x1f0] sm:$0xff]
          %v508 = vld [vmem:[#allocation10 + $0x1f8] sm:$0xff]
          %v509 = vld [vmem:[%s5] sm:$0xf]
          %v511 = vlaneseq
          %v512 = vshrl.u32 %v511, 7
          %v513 = vsub.s32 0, %v512
          %v514 = vrot.slane %v509, %v513
          %v515 = vlaneseq
          %v516 = vshrl.u32 %v515, 7
          %v517 = vsub.s32 1, %v516
          %v518 = vrot.slane %v509, %v517
          %v519 = vlaneseq
          %v520 = vshrl.u32 %v519, 7
          %v521 = vsub.s32 2, %v520
          %v522 = vrot.slane %v509, %v521
          %v523 = vlaneseq
          %v524 = vshrl.u32 %v523, 7
          %v525 = vsub.s32 3, %v524
          %v526 = vrot.slane %v509, %v525
          %v595 = vunpack.c.l.b16 %v445
          %v596 = vunpack.c.h.b16 %v445
          %v597 = vunpack.c.l.b16 %v446
          %v598 = vunpack.c.h.b16 %v446
          %v599 = vunpack.c.l.b16 %v447
          %v600 = vunpack.c.h.b16 %v447
          %v601 = vunpack.c.l.b16 %v448
          %v602 = vunpack.c.h.b16 %v448
          %v603 = vunpack.c.l.b16 %v449
          %v604 = vunpack.c.h.b16 %v449
          %v605 = vunpack.c.l.b16 %v450
          %v606 = vunpack.c.h.b16 %v450
          %v607 = vunpack.c.l.b16 %v451
          %v608 = vunpack.c.h.b16 %v451
          %v609 = vunpack.c.l.b16 %v452
          %v610 = vunpack.c.h.b16 %v452
          %v611 = vunpack.c.l.b16 %v453
          %v612 = vunpack.c.h.b16 %v453
          %v613 = vunpack.c.l.b16 %v454
          %v614 = vunpack.c.h.b16 %v454
          %v615 = vunpack.c.l.b16 %v455
          %v616 = vunpack.c.h.b16 %v455
          %v617 = vunpack.c.l.b16 %v456
          %v618 = vunpack.c.h.b16 %v456
          %v619 = vunpack.c.l.b16 %v457
          %v620 = vunpack.c.h.b16 %v457
          %v621 = vunpack.c.l.b16 %v458
          %v622 = vunpack.c.h.b16 %v458
          %v623 = vunpack.c.l.b16 %v459
          %v624 = vunpack.c.h.b16 %v459
          %v625 = vunpack.c.l.b16 %v460
          %v626 = vunpack.c.h.b16 %v460
          %v627 = vunpack.c.l.b16 %v461
          %v628 = vunpack.c.h.b16 %v461
          %v629 = vunpack.c.l.b16 %v462
          %v630 = vunpack.c.h.b16 %v462
          %v631 = vunpack.c.l.b16 %v463
          %v632 = vunpack.c.h.b16 %v463
          %v633 = vunpack.c.l.b16 %v464
          %v634 = vunpack.c.h.b16 %v464
          %v635 = vunpack.c.l.b16 %v465
          %v636 = vunpack.c.h.b16 %v465
          %v637 = vunpack.c.l.b16 %v466
          %v638 = vunpack.c.h.b16 %v466
          %v639 = vunpack.c.l.b16 %v467
          %v640 = vunpack.c.h.b16 %v467
          %v641 = vunpack.c.l.b16 %v468
          %v642 = vunpack.c.h.b16 %v468
          %v643 = vunpack.c.l.b16 %v469
          %v644 = vunpack.c.h.b16 %v469
          %v645 = vunpack.c.l.b16 %v470
          %v646 = vunpack.c.h.b16 %v470
          %v647 = vunpack.c.l.b16 %v471
          %v648 = vunpack.c.h.b16 %v471
          %v649 = vunpack.c.l.b16 %v472
          %v650 = vunpack.c.h.b16 %v472
          %v651 = vunpack.c.l.b16 %v473
          %v652 = vunpack.c.h.b16 %v473
          %v653 = vunpack.c.l.b16 %v474
          %v654 = vunpack.c.h.b16 %v474
          %v655 = vunpack.c.l.b16 %v475
          %v656 = vunpack.c.h.b16 %v475
          %v657 = vunpack.c.l.b16 %v476
          %v658 = vunpack.c.h.b16 %v476
          %v659 = vunpack.c.l.b16 %v477
          %v660 = vunpack.c.h.b16 %v477
          %v661 = vunpack.c.l.b16 %v478
          %v662 = vunpack.c.h.b16 %v478
          %v663 = vunpack.c.l.b16 %v479
          %v664 = vunpack.c.h.b16 %v479
          %v665 = vunpack.c.l.b16 %v480
          %v666 = vunpack.c.h.b16 %v480
          %v667 = vunpack.c.l.b16 %v481
          %v668 = vunpack.c.h.b16 %v481
          %v669 = vunpack.c.l.b16 %v482
          %v670 = vunpack.c.h.b16 %v482
          %v671 = vunpack.c.l.b16 %v483
          %v672 = vunpack.c.h.b16 %v483
          %v673 = vunpack.c.l.b16 %v484
          %v674 = vunpack.c.h.b16 %v484
          %v675 = vunpack.c.l.b16 %v485
          %v676 = vunpack.c.h.b16 %v485
          %v677 = vunpack.c.l.b16 %v486
          %v678 = vunpack.c.h.b16 %v486
          %v679 = vunpack.c.l.b16 %v487
          %v680 = vunpack.c.h.b16 %v487
          %v681 = vunpack.c.l.b16 %v488
          %v682 = vunpack.c.h.b16 %v488
          %v683 = vunpack.c.l.b16 %v489
          %v684 = vunpack.c.h.b16 %v489
          %v685 = vunpack.c.l.b16 %v490
          %v686 = vunpack.c.h.b16 %v490
          %v687 = vunpack.c.l.b16 %v491
          %v688 = vunpack.c.h.b16 %v491
          %v689 = vunpack.c.l.b16 %v492
          %v690 = vunpack.c.h.b16 %v492
          %v691 = vunpack.c.l.b16 %v493
          %v692 = vunpack.c.h.b16 %v493
          %v693 = vunpack.c.l.b16 %v494
          %v694 = vunpack.c.h.b16 %v494
          %v695 = vunpack.c.l.b16 %v495
          %v696 = vunpack.c.h.b16 %v495
          %v697 = vunpack.c.l.b16 %v496
          %v698 = vunpack.c.h.b16 %v496
          %v699 = vunpack.c.l.b16 %v497
          %v700 = vunpack.c.h.b16 %v497
          %v701 = vunpack.c.l.b16 %v498
          %v702 = vunpack.c.h.b16 %v498
          %v703 = vunpack.c.l.b16 %v499
          %v704 = vunpack.c.h.b16 %v499
          %v705 = vunpack.c.l.b16 %v500
          %v706 = vunpack.c.h.b16 %v500
          %v707 = vunpack.c.l.b16 %v501
          %v708 = vunpack.c.h.b16 %v501
          %v709 = vunpack.c.l.b16 %v502
          %v710 = vunpack.c.h.b16 %v502
          %v711 = vunpack.c.l.b16 %v503
          %v712 = vunpack.c.h.b16 %v503
          %v713 = vunpack.c.l.b16 %v504
          %v714 = vunpack.c.h.b16 %v504
          %v715 = vunpack.c.l.b16 %v505
          %v716 = vunpack.c.h.b16 %v505
          %v717 = vunpack.c.l.b16 %v506
          %v718 = vunpack.c.h.b16 %v506
          %v719 = vunpack.c.l.b16 %v507
          %v720 = vunpack.c.h.b16 %v507
          %v721 = vunpack.c.l.b16 %v508
          %v722 = vunpack.c.h.b16 %v508
          %v723 = vpack.c.b16 %v599, %v595
          %v724 = vpack.c.b16 %v600, %v596
          %v725 = vpack.c.b16 %v601, %v597
          %v726 = vpack.c.b16 %v602, %v598
          %v727 = vpack.c.b16 %v607, %v603
          %v728 = vpack.c.b16 %v608, %v604
          %v729 = vpack.c.b16 %v609, %v605
          %v730 = vpack.c.b16 %v610, %v606
          %v731 = vpack.c.b16 %v615, %v611
          %v732 = vpack.c.b16 %v616, %v612
          %v733 = vpack.c.b16 %v617, %v613
          %v734 = vpack.c.b16 %v618, %v614
          %v735 = vpack.c.b16 %v623, %v619
          %v736 = vpack.c.b16 %v624, %v620
          %v737 = vpack.c.b16 %v625, %v621
          %v738 = vpack.c.b16 %v626, %v622
          %v739 = vpack.c.b16 %v631, %v627
          %v740 = vpack.c.b16 %v632, %v628
          %v741 = vpack.c.b16 %v633, %v629
          %v742 = vpack.c.b16 %v634, %v630
          %v743 = vpack.c.b16 %v639, %v635
          %v744 = vpack.c.b16 %v640, %v636
          %v745 = vpack.c.b16 %v641, %v637
          %v746 = vpack.c.b16 %v642, %v638
          %v747 = vpack.c.b16 %v647, %v643
          %v748 = vpack.c.b16 %v648, %v644
          %v749 = vpack.c.b16 %v649, %v645
          %v750 = vpack.c.b16 %v650, %v646
          %v751 = vpack.c.b16 %v655, %v651
          %v752 = vpack.c.b16 %v656, %v652
          %v753 = vpack.c.b16 %v657, %v653
          %v754 = vpack.c.b16 %v658, %v654
          %v755 = vpack.c.b16 %v663, %v659
          %v756 = vpack.c.b16 %v664, %v660
          %v757 = vpack.c.b16 %v665, %v661
          %v758 = vpack.c.b16 %v666, %v662
          %v759 = vpack.c.b16 %v671, %v667
          %v760 = vpack.c.b16 %v672, %v668
          %v761 = vpack.c.b16 %v673, %v669
          %v762 = vpack.c.b16 %v674, %v670
          %v763 = vpack.c.b16 %v679, %v675
          %v764 = vpack.c.b16 %v680, %v676
          %v765 = vpack.c.b16 %v681, %v677
          %v766 = vpack.c.b16 %v682, %v678
          %v767 = vpack.c.b16 %v687, %v683
          %v768 = vpack.c.b16 %v688, %v684
          %v769 = vpack.c.b16 %v689, %v685
          %v770 = vpack.c.b16 %v690, %v686
          %v771 = vpack.c.b16 %v695, %v691
          %v772 = vpack.c.b16 %v696, %v692
          %v773 = vpack.c.b16 %v697, %v693
          %v774 = vpack.c.b16 %v698, %v694
          %v775 = vpack.c.b16 %v703, %v699
          %v776 = vpack.c.b16 %v704, %v700
          %v777 = vpack.c.b16 %v705, %v701
          %v778 = vpack.c.b16 %v706, %v702
          %v779 = vpack.c.b16 %v711, %v707
          %v780 = vpack.c.b16 %v712, %v708
          %v781 = vpack.c.b16 %v713, %v709
          %v782 = vpack.c.b16 %v714, %v710
          %v783 = vpack.c.b16 %v719, %v715
          %v784 = vpack.c.b16 %v720, %v716
          %v785 = vpack.c.b16 %v721, %v717
          %v786 = vpack.c.b16 %v722, %v718
          %851 = vmatprep.subr.bf16.mxu0 %v724
          %852 = vmatpush1.bf16.msra.mxu0 %v723
          %853 = vmatprep.subr.bf16.mxu0 %v728
          %854 = vmatpush1.bf16.msra.mxu0 %v727
          %855 = vmatprep.subr.bf16.mxu0 %v732
          %856 = vmatpush1.bf16.msra.mxu0 %v731
          %857 = vmatprep.subr.bf16.mxu0 %v736
          %858 = vmatpush1.bf16.msra.mxu0 %v735
          %859 = vmatprep.subr.bf16.mxu0 %v740
          %860 = vmatpush1.bf16.msra.mxu0 %v739
          %861 = vmatprep.subr.bf16.mxu0 %v744
          %862 = vmatpush1.bf16.msra.mxu0 %v743
          %863 = vmatprep.subr.bf16.mxu0 %v748
          %864 = vmatpush1.bf16.msra.mxu0 %v747
          %865 = vmatprep.subr.bf16.mxu0 %v752
          %866 = vmatpush1.bf16.msra.mxu0 %v751
          %867 = vmatprep.subr.bf16.mxu0 %v756
          %868 = vmatpush1.bf16.msra.mxu0 %v755
          %869 = vmatprep.subr.bf16.mxu0 %v760
          %870 = vmatpush1.bf16.msra.mxu0 %v759
          %871 = vmatprep.subr.bf16.mxu0 %v764
          %872 = vmatpush1.bf16.msra.mxu0 %v763
          %873 = vmatprep.subr.bf16.mxu0 %v768
          %874 = vmatpush1.bf16.msra.mxu0 %v767
          %875 = vmatprep.subr.bf16.mxu0 %v772
          %876 = vmatpush1.bf16.msra.mxu0 %v771
          %877 = vmatprep.subr.bf16.mxu0 %v776
          %878 = vmatpush1.bf16.msra.mxu0 %v775
          %879 = vmatprep.subr.bf16.mxu0 %v780
          %880 = vmatpush1.bf16.msra.mxu0 %v779
          %881 = vmatprep.subr.bf16.mxu0 %v784
          %882 = vmatpush1.bf16.msra.mxu0 %v783
          %883 = vmatprep.mubr.bf16.mxu0 %v442
          %884 = vmatmul.mubr.bf16.gmra.mrb[0].mxu0 %v441
          %v885 = vpop.f32.mrb[0].mxu0
          %v886 = vadd.f32 %v514, %v885
          %v887 = vpop.f32.mrb[0].mxu0
          %v888 = vadd.f32 %v518, %v887
          %v889 = vpop.f32.mrb[0].mxu0
          %v890 = vadd.f32 %v514, %v889
          %v891 = vpop.f32.mrb[0].mxu0
          %v892 = vadd.f32 %v518, %v891
          %893 = vmatprep.mubr.bf16.mxu0 %v444
          %894 = vmatmul.mubr.bf16.gmra.mrb[0].mxu0 %v443
          %v895 = vpop.f32.mrb[0].mxu0
          %v896 = vadd.f32 %v514, %v895
          %v897 = vpop.f32.mrb[0].mxu0
          %v898 = vadd.f32 %v518, %v897
          %v899 = vpop.f32.mrb[0].mxu0
          %v900 = vadd.f32 %v514, %v899
          %v901 = vpop.f32.mrb[0].mxu0
          %v902 = vadd.f32 %v518, %v901
          %903 = vdwg.mxu0
          %904 = vmatprep.subr.bf16.mxu0 %v726
          %905 = vmatpush1.bf16.msra.mxu0 %v725
          %906 = vmatprep.subr.bf16.mxu0 %v730
          %907 = vmatpush1.bf16.msra.mxu0 %v729
          %908 = vmatprep.subr.bf16.mxu0 %v734
          %909 = vmatpush1.bf16.msra.mxu0 %v733
          %910 = vmatprep.subr.bf16.mxu0 %v738
          %911 = vmatpush1.bf16.msra.mxu0 %v737
          %912 = vmatprep.subr.bf16.mxu0 %v742
          %913 = vmatpush1.bf16.msra.mxu0 %v741
          %914 = vmatprep.subr.bf16.mxu0 %v746
          %915 = vmatpush1.bf16.msra.mxu0 %v745
          %916 = vmatprep.subr.bf16.mxu0 %v750
          %917 = vmatpush1.bf16.msra.mxu0 %v749
          %918 = vmatprep.subr.bf16.mxu0 %v754
          %919 = vmatpush1.bf16.msra.mxu0 %v753
          %920 = vmatprep.subr.bf16.mxu0 %v758
          %921 = vmatpush1.bf16.msra.mxu0 %v757
          %922 = vmatprep.subr.bf16.mxu0 %v762
          %923 = vmatpush1.bf16.msra.mxu0 %v761
          %924 = vmatprep.subr.bf16.mxu0 %v766
          %925 = vmatpush1.bf16.msra.mxu0 %v765
          %926 = vmatprep.subr.bf16.mxu0 %v770
          %927 = vmatpush1.bf16.msra.mxu0 %v769
          %928 = vmatprep.subr.bf16.mxu0 %v774
          %929 = vmatpush1.bf16.msra.mxu0 %v773
          %930 = vmatprep.subr.bf16.mxu0 %v778
          %931 = vmatpush1.bf16.msra.mxu0 %v777
          %932 = vmatprep.subr.bf16.mxu0 %v782
          %933 = vmatpush1.bf16.msra.mxu0 %v781
          %934 = vmatprep.subr.bf16.mxu0 %v786
          %935 = vmatpush1.bf16.msra.mxu0 %v785
          %936 = vmatprep.mubr.bf16.mxu0 %v442
          %937 = vmatmul.mubr.bf16.gmra.mrb[0].mxu0 %v441
          %v938 = vpop.f32.mrb[0].mxu0
          %v939 = vadd.f32 %v522, %v938
          %v940 = vpop.f32.mrb[0].mxu0
          %v941 = vadd.f32 %v526, %v940
          %v942 = vpop.f32.mrb[0].mxu0
          %v943 = vadd.f32 %v522, %v942
          %v944 = vpop.f32.mrb[0].mxu0
          %v945 = vadd.f32 %v526, %v944
          %946 = vmatprep.mubr.bf16.mxu0 %v444
          %947 = vmatmul.mubr.bf16.gmra.mrb[0].mxu0 %v443
          %v948 = vpop.f32.mrb[0].mxu0
          %v949 = vadd.f32 %v522, %v948
          %v950 = vpop.f32.mrb[0].mxu0
          %v951 = vadd.f32 %v526, %v950
          %v952 = vpop.f32.mrb[0].mxu0
          %v953 = vadd.f32 %v522, %v952
          %v954 = vpop.f32.mrb[0].mxu0
          %v955 = vadd.f32 %v526, %v954
          %956 = vdwg.mxu0
          %v957 = vpack.c.bf16 %v890, %v886
          %v958 = vpack.c.bf16 %v900, %v896
          %vm959 = vcmask 261120
          %960 = vst.msk [vmem:[#allocation2] sm:$0xff] %vm959, %v957
          %961 = vst.msk [vmem:[#allocation2 + $0x8] sm:$0xff] %vm959, %v958
          %964 = vrot.lane.b32.xlu0 %v957, 96
          %v965 = vpop.permute.xlu0 %964
          %966 = vrot.lane.b32.xlu0 %v958, 96
          %v967 = vpop.permute.xlu0 %966
          %s970 = scalar_lea.vmem [#allocation2], 16
          %971 = vst.msk [vmem:[%s970] sm:$0xff] %vm959, %v965
          %972 = vst.msk [vmem:[%s970 + $0x8] sm:$0xff] %vm959, %v967
          %973 = vrot.lane.b32.xlu0 %v957, 64
          %v974 = vpop.permute.xlu0 %973
          %975 = vrot.lane.b32.xlu0 %v958, 64
          %v976 = vpop.permute.xlu0 %975
          %s979 = scalar_lea.vmem [#allocation2], 32
          %980 = vst.msk [vmem:[%s979] sm:$0xff] %vm959, %v974
          %981 = vst.msk [vmem:[%s979 + $0x8] sm:$0xff] %vm959, %v976
          %982 = vrot.lane.b32.xlu0 %v957, 32
          %v983 = vpop.permute.xlu0 %982
          %984 = vrot.lane.b32.xlu0 %v958, 32
          %v985 = vpop.permute.xlu0 %984
          %s988 = scalar_lea.vmem [#allocation2], 48
          %989 = vst.msk [vmem:[%s988] sm:$0xff] %vm959, %v983
          %990 = vst.msk [vmem:[%s988 + $0x8] sm:$0xff] %vm959, %v985
          %v991 = vpack.c.bf16 %v892, %v888
          %v992 = vpack.c.bf16 %v902, %v898
          %s993 = scalar_lea.vmem [#allocation2], 64
          %994 = vst.msk [vmem:[%s993] sm:$0xff] %vm959, %v991
          %995 = vst.msk [vmem:[%s993 + $0x8] sm:$0xff] %vm959, %v992
          %998 = vrot.lane.b32.xlu0 %v991, 96
          %v999 = vpop.permute.xlu0 %998
          %1000 = vrot.lane.b32.xlu0 %v992, 96
          %v1001 = vpop.permute.xlu0 %1000
          %s1004 = scalar_lea.vmem [#allocation2], 80
          %1005 = vst.msk [vmem:[%s1004] sm:$0xff] %vm959, %v999
          %1006 = vst.msk [vmem:[%s1004 + $0x8] sm:$0xff] %vm959, %v1001
          %1007 = vrot.lane.b32.xlu0 %v991, 64
          %v1008 = vpop.permute.xlu0 %1007
          %1009 = vrot.lane.b32.xlu0 %v992, 64
          %v1010 = vpop.permute.xlu0 %1009
          %s1013 = scalar_lea.vmem [#allocation2], 96
          %1014 = vst.msk [vmem:[%s1013] sm:$0xff] %vm959, %v1008
          %1015 = vst.msk [vmem:[%s1013 + $0x8] sm:$0xff] %vm959, %v1010
          %1016 = vrot.lane.b32.xlu0 %v991, 32
          %v1017 = vpop.permute.xlu0 %1016
          %1018 = vrot.lane.b32.xlu0 %v992, 32
          %v1019 = vpop.permute.xlu0 %1018
          %s1022 = scalar_lea.vmem [#allocation2], 112
          %1023 = vst.msk [vmem:[%s1022] sm:$0xff] %vm959, %v1017
          %1024 = vst.msk [vmem:[%s1022 + $0x8] sm:$0xff] %vm959, %v1019
          %v1025 = vpack.c.bf16 %v943, %v939
          %v1026 = vpack.c.bf16 %v953, %v949
          %s1027 = scalar_lea.vmem [#allocation2], 128
          %1028 = vst.msk [vmem:[%s1027] sm:$0xff] %vm959, %v1025
          %1029 = vst.msk [vmem:[%s1027 + $0x8] sm:$0xff] %vm959, %v1026
          %1032 = vrot.lane.b32.xlu0 %v1025, 96
          %v1033 = vpop.permute.xlu0 %1032
          %1034 = vrot.lane.b32.xlu0 %v1026, 96
          %v1035 = vpop.permute.xlu0 %1034
          %s1038 = scalar_lea.vmem [#allocation2], 144
          %1039 = vst.msk [vmem:[%s1038] sm:$0xff] %vm959, %v1033
          %1040 = vst.msk [vmem:[%s1038 + $0x8] sm:$0xff] %vm959, %v1035
          %1041 = vrot.lane.b32.xlu0 %v1025, 64
          %v1042 = vpop.permute.xlu0 %1041
          %1043 = vrot.lane.b32.xlu0 %v1026, 64
          %v1044 = vpop.permute.xlu0 %1043
          %s1047 = scalar_lea.vmem [#allocation2], 160
          %1048 = vst.msk [vmem:[%s1047] sm:$0xff] %vm959, %v1042
          %1049 = vst.msk [vmem:[%s1047 + $0x8] sm:$0xff] %vm959, %v1044
          %1050 = vrot.lane.b32.xlu0 %v1025, 32
          %v1051 = vpop.permute.xlu0 %1050
          %1052 = vrot.lane.b32.xlu0 %v1026, 32
          %v1053 = vpop.permute.xlu0 %1052
          %s1056 = scalar_lea.vmem [#allocation2], 176
          %1057 = vst.msk [vmem:[%s1056] sm:$0xff] %vm959, %v1051
          %1058 = vst.msk [vmem:[%s1056 + $0x8] sm:$0xff] %vm959, %v1053
          %v1059 = vpack.c.bf16 %v945, %v941
          %v1060 = vpack.c.bf16 %v955, %v951
          %s1061 = scalar_lea.vmem [#allocation2], 192
          %1062 = vst.msk [vmem:[%s1061] sm:$0xff] %vm959, %v1059
          %1063 = vst.msk [vmem:[%s1061 + $0x8] sm:$0xff] %vm959, %v1060
          %1066 = vrot.lane.b32.xlu0 %v1059, 96
          %v1067 = vpop.permute.xlu0 %1066
          %1068 = vrot.lane.b32.xlu0 %v1060, 96
          %v1069 = vpop.permute.xlu0 %1068
          %s1072 = scalar_lea.vmem [#allocation2], 208
          %1073 = vst.msk [vmem:[%s1072] sm:$0xff] %vm959, %v1067
          %1074 = vst.msk [vmem:[%s1072 + $0x8] sm:$0xff] %vm959, %v1069
          %1075 = vrot.lane.b32.xlu0 %v1059, 64
          %v1076 = vpop.permute.xlu0 %1075
          %1077 = vrot.lane.b32.xlu0 %v1060, 64
          %v1078 = vpop.permute.xlu0 %1077
          %s1081 = scalar_lea.vmem [#allocation2], 224
          %1082 = vst.msk [vmem:[%s1081] sm:$0xff] %vm959, %v1076
          %1083 = vst.msk [vmem:[%s1081 + $0x8] sm:$0xff] %vm959, %v1078
          %1084 = vrot.lane.b32.xlu0 %v1059, 32
          %v1085 = vpop.permute.xlu0 %1084
          %1086 = vrot.lane.b32.xlu0 %v1060, 32
          %v1087 = vpop.permute.xlu0 %1086
          %s1090 = scalar_lea.vmem [#allocation2], 240
          %1091 = vst.msk [vmem:[%s1090] sm:$0xff] %vm959, %v1085
          %1092 = vst.msk [vmem:[%s1090 + $0x8] sm:$0xff] %vm959, %v1087
        $region76: #{tpu_custom_call.1} parent=51 // pred_fallthru
          _
        %v1093 = vld [vmem:[%s367] sm:$0xff]
        %v1094 = vld [vmem:[%s367 + $0x8] sm:$0xff]
        %v1095 = vld [vmem:[%s367 + $0x10] sm:$0xff]
        %v1096 = vld [vmem:[%s367 + $0x18] sm:$0xff]
        %v1097 = vpack.c.bf16 %v1095, %v1093
        %v1098 = vpack.c.bf16 %v1096, %v1094
        %v1099 = vld [vmem:[#allocation9] sm:$0xff]
        %v1100 = vld [vmem:[#allocation9 + $0x8] sm:$0xff]
        %v1101 = vld [vmem:[#allocation9 + $0x10] sm:$0xff]
        %v1102 = vld [vmem:[#allocation9 + $0x18] sm:$0xff]
        %v1103 = vld [vmem:[#allocation9 + $0x20] sm:$0xff]
        %v1104 = vld [vmem:[#allocation9 + $0x28] sm:$0xff]
        %v1105 = vld [vmem:[#allocation9 + $0x30] sm:$0xff]
        %v1106 = vld [vmem:[#allocation9 + $0x38] sm:$0xff]
        %v1107 = vld [vmem:[#allocation9 + $0x40] sm:$0xff]
        %v1108 = vld [vmem:[#allocation9 + $0x48] sm:$0xff]
        %v1109 = vld [vmem:[#allocation9 + $0x50] sm:$0xff]
        %v1110 = vld [vmem:[#allocation9 + $0x58] sm:$0xff]
        %v1111 = vld [vmem:[#allocation9 + $0x60] sm:$0xff]
        %v1112 = vld [vmem:[#allocation9 + $0x68] sm:$0xff]
        %v1113 = vld [vmem:[#allocation9 + $0x70] sm:$0xff]
        %v1114 = vld [vmem:[#allocation9 + $0x78] sm:$0xff]
        %v1115 = vld [vmem:[#allocation9 + $0x80] sm:$0xff]
        %v1116 = vld [vmem:[#allocation9 + $0x88] sm:$0xff]
        %v1117 = vld [vmem:[#allocation9 + $0x90] sm:$0xff]
        %v1118 = vld [vmem:[#allocation9 + $0x98] sm:$0xff]
        %v1119 = vld [vmem:[#allocation9 + $0xa0] sm:$0xff]
        %v1120 = vld [vmem:[#allocation9 + $0xa8] sm:$0xff]
        %v1121 = vld [vmem:[#allocation9 + $0xb0] sm:$0xff]
        %v1122 = vld [vmem:[#allocation9 + $0xb8] sm:$0xff]
        %v1123 = vld [vmem:[#allocation9 + $0xc0] sm:$0xff]
        %v1124 = vld [vmem:[#allocation9 + $0xc8] sm:$0xff]
        %v1125 = vld [vmem:[#allocation9 + $0xd0] sm:$0xff]
        %v1126 = vld [vmem:[#allocation9 + $0xd8] sm:$0xff]
        %v1127 = vld [vmem:[#allocation9 + $0xe0] sm:$0xff]
        %v1128 = vld [vmem:[#allocation9 + $0xe8] sm:$0xff]
        %v1129 = vld [vmem:[#allocation9 + $0xf0] sm:$0xff]
        %v1130 = vld [vmem:[#allocation9 + $0xf8] sm:$0xff]
        %v1131 = vld [vmem:[%s3] sm:$0x3]
        %v1133 = vlaneseq
        %v1134 = vshrl.u32 %v1133, 7
        %v1135 = vsub.s32 0, %v1134
        %v1136 = vrot.slane %v1131, %v1135
        %v1137 = vlaneseq
        %v1138 = vshrl.u32 %v1137, 7
        %v1139 = vsub.s32 1, %v1138
        %v1140 = vrot.slane %v1131, %v1139
        %v1175 = vunpack.c.l.b16 %v1099
        %v1176 = vunpack.c.h.b16 %v1099
        %v1177 = vunpack.c.l.b16 %v1100
        %v1178 = vunpack.c.h.b16 %v1100
        %v1179 = vunpack.c.l.b16 %v1101
        %v1180 = vunpack.c.h.b16 %v1101
        %v1181 = vunpack.c.l.b16 %v1102
        %v1182 = vunpack.c.h.b16 %v1102
        %v1183 = vunpack.c.l.b16 %v1103
        %v1184 = vunpack.c.h.b16 %v1103
        %v1185 = vunpack.c.l.b16 %v1104
        %v1186 = vunpack.c.h.b16 %v1104
        %v1187 = vunpack.c.l.b16 %v1105
        %v1188 = vunpack.c.h.b16 %v1105
        %v1189 = vunpack.c.l.b16 %v1106
        %v1190 = vunpack.c.h.b16 %v1106
        %v1191 = vunpack.c.l.b16 %v1107
        %v1192 = vunpack.c.h.b16 %v1107
        %v1193 = vunpack.c.l.b16 %v1108
        %v1194 = vunpack.c.h.b16 %v1108
        %v1195 = vunpack.c.l.b16 %v1109
        %v1196 = vunpack.c.h.b16 %v1109
        %v1197 = vunpack.c.l.b16 %v1110
        %v1198 = vunpack.c.h.b16 %v1110
        %v1199 = vunpack.c.l.b16 %v1111
        %v1200 = vunpack.c.h.b16 %v1111
        %v1201 = vunpack.c.l.b16 %v1112
        %v1202 = vunpack.c.h.b16 %v1112
        %v1203 = vunpack.c.l.b16 %v1113
        %v1204 = vunpack.c.h.b16 %v1113
        %v1205 = vunpack.c.l.b16 %v1114
        %v1206 = vunpack.c.h.b16 %v1114
        %v1207 = vunpack.c.l.b16 %v1115
        %v1208 = vunpack.c.h.b16 %v1115
        %v1209 = vunpack.c.l.b16 %v1116
        %v1210 = vunpack.c.h.b16 %v1116
        %v1211 = vunpack.c.l.b16 %v1117
        %v1212 = vunpack.c.h.b16 %v1117
        %v1213 = vunpack.c.l.b16 %v1118
        %v1214 = vunpack.c.h.b16 %v1118
        %v1215 = vunpack.c.l.b16 %v1119
        %v1216 = vunpack.c.h.b16 %v1119
        %v1217 = vunpack.c.l.b16 %v1120
        %v1218 = vunpack.c.h.b16 %v1120
        %v1219 = vunpack.c.l.b16 %v1121
        %v1220 = vunpack.c.h.b16 %v1121
        %v1221 = vunpack.c.l.b16 %v1122
        %v1222 = vunpack.c.h.b16 %v1122
        %v1223 = vunpack.c.l.b16 %v1123
        %v1224 = vunpack.c.h.b16 %v1123
        %v1225 = vunpack.c.l.b16 %v1124
        %v1226 = vunpack.c.h.b16 %v1124
        %v1227 = vunpack.c.l.b16 %v1125
        %v1228 = vunpack.c.h.b16 %v1125
        %v1229 = vunpack.c.l.b16 %v1126
        %v1230 = vunpack.c.h.b16 %v1126
        %v1231 = vunpack.c.l.b16 %v1127
        %v1232 = vunpack.c.h.b16 %v1127
        %v1233 = vunpack.c.l.b16 %v1128
        %v1234 = vunpack.c.h.b16 %v1128
        %v1235 = vunpack.c.l.b16 %v1129
        %v1236 = vunpack.c.h.b16 %v1129
        %v1237 = vunpack.c.l.b16 %v1130
        %v1238 = vunpack.c.h.b16 %v1130
        %v1239 = vpack.c.b16 %v1177, %v1175
        %v1240 = vpack.c.b16 %v1178, %v1176
        %v1241 = vpack.c.b16 %v1181, %v1179
        %v1242 = vpack.c.b16 %v1182, %v1180
        %v1243 = vpack.c.b16 %v1185, %v1183
        %v1244 = vpack.c.b16 %v1186, %v1184
        %v1245 = vpack.c.b16 %v1189, %v1187
        %v1246 = vpack.c.b16 %v1190, %v1188
        %v1247 = vpack.c.b16 %v1193, %v1191
        %v1248 = vpack.c.b16 %v1194, %v1192
        %v1249 = vpack.c.b16 %v1197, %v1195
        %v1250 = vpack.c.b16 %v1198, %v1196
        %v1251 = vpack.c.b16 %v1201, %v1199
        %v1252 = vpack.c.b16 %v1202, %v1200
        %v1253 = vpack.c.b16 %v1205, %v1203
        %v1254 = vpack.c.b16 %v1206, %v1204
        %v1255 = vpack.c.b16 %v1209, %v1207
        %v1256 = vpack.c.b16 %v1210, %v1208
        %v1257 = vpack.c.b16 %v1213, %v1211
        %v1258 = vpack.c.b16 %v1214, %v1212
        %v1259 = vpack.c.b16 %v1217, %v1215
        %v1260 = vpack.c.b16 %v1218, %v1216
        %v1261 = vpack.c.b16 %v1221, %v1219
        %v1262 = vpack.c.b16 %v1222, %v1220
        %v1263 = vpack.c.b16 %v1225, %v1223
        %v1264 = vpack.c.b16 %v1226, %v1224
        %v1265 = vpack.c.b16 %v1229, %v1227
        %v1266 = vpack.c.b16 %v1230, %v1228
        %v1267 = vpack.c.b16 %v1233, %v1231
        %v1268 = vpack.c.b16 %v1234, %v1232
        %v1269 = vpack.c.b16 %v1237, %v1235
        %v1270 = vpack.c.b16 %v1238, %v1236
        %1303 = vmatprep.subr.bf16.mxu0 %v1240
        %1304 = vmatpush1.bf16.msra.mxu0 %v1239
        %1305 = vmatprep.subr.bf16.mxu0 %v1242
        %1306 = vmatpush1.bf16.msra.mxu0 %v1241
        %1307 = vmatprep.subr.bf16.mxu0 %v1244
        %1308 = vmatpush1.bf16.msra.mxu0 %v1243
        %1309 = vmatprep.subr.bf16.mxu0 %v1246
        %1310 = vmatpush1.bf16.msra.mxu0 %v1245
        %1311 = vmatprep.subr.bf16.mxu0 %v1248
        %1312 = vmatpush1.bf16.msra.mxu0 %v1247
        %1313 = vmatprep.subr.bf16.mxu0 %v1250
        %1314 = vmatpush1.bf16.msra.mxu0 %v1249
        %1315 = vmatprep.subr.bf16.mxu0 %v1252
        %1316 = vmatpush1.bf16.msra.mxu0 %v1251
        %1317 = vmatprep.subr.bf16.mxu0 %v1254
        %1318 = vmatpush1.bf16.msra.mxu0 %v1253
        %1319 = vmatprep.subr.bf16.mxu0 %v1256
        %1320 = vmatpush1.bf16.msra.mxu0 %v1255
        %1321 = vmatprep.subr.bf16.mxu0 %v1258
        %1322 = vmatpush1.bf16.msra.mxu0 %v1257
        %1323 = vmatprep.subr.bf16.mxu0 %v1260
        %1324 = vmatpush1.bf16.msra.mxu0 %v1259
        %1325 = vmatprep.subr.bf16.mxu0 %v1262
        %1326 = vmatpush1.bf16.msra.mxu0 %v1261
        %1327 = vmatprep.subr.bf16.mxu0 %v1264
        %1328 = vmatpush1.bf16.msra.mxu0 %v1263
        %1329 = vmatprep.subr.bf16.mxu0 %v1266
        %1330 = vmatpush1.bf16.msra.mxu0 %v1265
        %1331 = vmatprep.subr.bf16.mxu0 %v1268
        %1332 = vmatpush1.bf16.msra.mxu0 %v1267
        %1333 = vmatprep.subr.bf16.mxu0 %v1270
        %1334 = vmatpush1.bf16.msra.mxu0 %v1269
        %1335 = vmatprep.mubr.bf16.mxu0 %v1098
        %1336 = vmatmul.mubr.bf16.gmra.mrb[0].mxu0 %v1097
        %v1337 = vpop.f32.mrb[0].mxu0
        %v1338 = vadd.f32 %v1136, %v1337
        %v1339 = vpop.f32.mrb[0].mxu0
        %v1340 = vadd.f32 %v1140, %v1339
        %v1341 = vpop.f32.mrb[0].mxu0
        %v1342 = vadd.f32 %v1136, %v1341
        %v1343 = vpop.f32.mrb[0].mxu0
        %v1344 = vadd.f32 %v1140, %v1343
        %1345 = vdwg.mxu0
        %v1346 = vpack.c.bf16 %v1342, %v1338
        %vm1347 = vcmask 261120
        %1348 = vst.msk [vmem:[#allocation3] sm:$0xff] %vm1347, %v1346
        %1350 = vrot.lane.b32.xlu0 %v1346, 96
        %v1351 = vpop.permute.xlu0 %1350
        %s1353 = scalar_lea.vmem [#allocation3], 8
        %1354 = vst.msk [vmem:[%s1353] sm:$0xff] %vm1347, %v1351
        %1355 = vrot.lane.b32.xlu0 %v1346, 64
        %v1356 = vpop.permute.xlu0 %1355
        %s1358 = scalar_lea.vmem [#allocation3], 16
        %1359 = vst.msk [vmem:[%s1358] sm:$0xff] %vm1347, %v1356
        %1360 = vrot.lane.b32.xlu0 %v1346, 32
        %v1361 = vpop.permute.xlu0 %1360
        %s1363 = scalar_lea.vmem [#allocation3], 24
        %1364 = vst.msk [vmem:[%s1363] sm:$0xff] %vm1347, %v1361
        %v1365 = vpack.c.bf16 %v1344, %v1340
        %s1366 = scalar_lea.vmem [#allocation3], 32
        %1367 = vst.msk [vmem:[%s1366] sm:$0xff] %vm1347, %v1365
        %1369 = vrot.lane.b32.xlu0 %v1365, 96
        %v1370 = vpop.permute.xlu0 %1369
        %s1372 = scalar_lea.vmem [#allocation3], 40
        %1373 = vst.msk [vmem:[%s1372] sm:$0xff] %vm1347, %v1370
        %1374 = vrot.lane.b32.xlu0 %v1365, 64
        %v1375 = vpop.permute.xlu0 %1374
        %s1377 = scalar_lea.vmem [#allocation3], 48
        %1378 = vst.msk [vmem:[%s1377] sm:$0xff] %vm1347, %v1375
        %1379 = vrot.lane.b32.xlu0 %v1365, 32
        %v1380 = vpop.permute.xlu0 %1379
        %s1382 = scalar_lea.vmem [#allocation3], 56
        %1383 = vst.msk [vmem:[%s1382] sm:$0xff] %vm1347, %v1380
        %v1384 = vld [vmem:[#allocation3] sm:$0xff]
        %v1385 = vld [vmem:[#allocation3 + $0x8] sm:$0xff]
        %v1386 = vld [vmem:[#allocation3 + $0x10] sm:$0xff]
        %v1387 = vld [vmem:[#allocation3 + $0x18] sm:$0xff]
        %v1388 = vld [vmem:[#allocation3 + $0x20] sm:$0xff]
        %v1389 = vld [vmem:[#allocation3 + $0x28] sm:$0xff]
        %v1390 = vld [vmem:[#allocation3 + $0x30] sm:$0xff]
        %v1391 = vld [vmem:[#allocation3 + $0x38] sm:$0xff]
        %v1392 = vld [vmem:[#allocation2] sm:$0xff]
        %v1393 = vld [vmem:[#allocation2 + $0x8] sm:$0xff]
        %v1394 = vld [vmem:[#allocation2 + $0x10] sm:$0xff]
        %v1395 = vld [vmem:[#allocation2 + $0x18] sm:$0xff]
        %v1396 = vld [vmem:[#allocation2 + $0x20] sm:$0xff]
        %v1397 = vld [vmem:[#allocation2 + $0x28] sm:$0xff]
        %v1398 = vld [vmem:[#allocation2 + $0x30] sm:$0xff]
        %v1399 = vld [vmem:[#allocation2 + $0x38] sm:$0xff]
        %v1400 = vld [vmem:[#allocation2 + $0x40] sm:$0xff]
        %v1401 = vld [vmem:[#allocation2 + $0x48] sm:$0xff]
        %v1402 = vld [vmem:[#allocation2 + $0x50] sm:$0xff]
        %v1403 = vld [vmem:[#allocation2 + $0x58] sm:$0xff]
        %v1404 = vld [vmem:[#allocation2 + $0x60] sm:$0xff]
        %v1405 = vld [vmem:[#allocation2 + $0x68] sm:$0xff]
        %v1406 = vld [vmem:[#allocation2 + $0x70] sm:$0xff]
        %v1407 = vld [vmem:[#allocation2 + $0x78] sm:$0xff]
        %v1408 = vld [vmem:[#allocation2 + $0x80] sm:$0xff]
        %v1409 = vld [vmem:[#allocation2 + $0x88] sm:$0xff]
        %v1410 = vld [vmem:[#allocation2 + $0x90] sm:$0xff]
        %v1411 = vld [vmem:[#allocation2 + $0x98] sm:$0xff]
        %v1412 = vld [vmem:[#allocation2 + $0xa0] sm:$0xff]
        %v1413 = vld [vmem:[#allocation2 + $0xa8] sm:$0xff]
        %v1414 = vld [vmem:[#allocation2 + $0xb0] sm:$0xff]
        %v1415 = vld [vmem:[#allocation2 + $0xb8] sm:$0xff]
        %v1416 = vld [vmem:[#allocation2 + $0xc0] sm:$0xff]
        %v1417 = vld [vmem:[#allocation2 + $0xc8] sm:$0xff]
        %v1418 = vld [vmem:[#allocation2 + $0xd0] sm:$0xff]
        %v1419 = vld [vmem:[#allocation2 + $0xd8] sm:$0xff]
        %v1420 = vld [vmem:[#allocation2 + $0xe0] sm:$0xff]
        %v1421 = vld [vmem:[#allocation2 + $0xe8] sm:$0xff]
        %v1422 = vld [vmem:[#allocation2 + $0xf0] sm:$0xff]
        %v1423 = vld [vmem:[#allocation2 + $0xf8] sm:$0xff]
        %v1425 = vsel %vm1347, %v1384, 0
        %v1428 = vsel %vm1347, %v1392, 0
        %v1431 = vsel %vm1347, %v1393, 0
        %1433 = vmatprep.subr.bf16.mxu0 0
        %1434 = vmatpush1.bf16.xpose.msra.mxu0 %v1428
        %1435 = vmatprep.subr.bf16.mxu0 0
        %1436 = vmatpush1.bf16.xpose.msra.mxu0 %v1431
        %1437 = vmatprep.subr.bf16.mxu0 0
        %1438 = vmatpush1.bf16.xpose.msra.mxu0 0
        %1439 = vmatprep.subr.bf16.mxu0 0
        %1440 = vmatpush1.bf16.xpose.msra.mxu0 0
        %1441 = vmatprep.subr.bf16.mxu0 0
        %1442 = vmatpush1.bf16.xpose.msra.mxu0 0
        %1443 = vmatprep.subr.bf16.mxu0 0
        %1444 = vmatpush1.bf16.xpose.msra.mxu0 0
        %1445 = vmatprep.subr.bf16.mxu0 0
        %1446 = vmatpush1.bf16.xpose.msra.mxu0 0
        %1447 = vmatprep.subr.bf16.mxu0 0
        %1448 = vmatpush1.bf16.xpose.msra.mxu0 0
        %1449 = vmatprep.subr.bf16.mxu0 0
        %1450 = vmatpush1.bf16.xpose.msra.mxu0 0
        %1451 = vmatprep.subr.bf16.mxu0 0
        %1452 = vmatpush1.bf16.xpose.msra.mxu0 0
        %1453 = vmatprep.subr.bf16.mxu0 0
        %1454 = vmatpush1.bf16.xpose.msra.mxu0 0
        %1455 = vmatprep.subr.bf16.mxu0 0
        %1456 = vmatpush1.bf16.xpose.msra.mxu0 0
        %1457 = vmatprep.subr.bf16.mxu0 0
        %1458 = vmatpush1.bf16.xpose.msra.mxu0 0
        %1459 = vmatprep.subr.bf16.mxu0 0
        %1460 = vmatpush1.bf16.xpose.msra.mxu0 0
        %1461 = vmatprep.subr.bf16.mxu0 0
        %1462 = vmatpush1.bf16.xpose.msra.mxu0 0
        %1463 = vmatprep.subr.bf16.mxu0 0
        %1464 = vmatpush1.bf16.xpose.msra.mxu0 0
        %1465 = vmatprep.mubr.bf16.mxu0 0
        %1466 = vmatmul.mubr.bf16.gmra.mrb[0].mxu0 %v1425
        %v1467 = vpop.f32.mrb[0].mxu0
        %v1468 = vadd.f32 0.0, %v1467
        %v1469 = vpop.f32.mrb[0].mxu0
        %v1470 = vpop.f32.mrb[0].mxu0
        %v1471 = vadd.f32 0.0, %v1470
        %v1472 = vpop.f32.mrb[0].mxu0
        %1473 = vdwg.mxu0
        %v1475 = vsel %vm1347, %v1385, 0
        %v1478 = vsel %vm1347, %v1394, 0
        %v1481 = vsel %vm1347, %v1395, 0
        %1483 = vmatprep.subr.bf16.mxu0 0
        %1484 = vmatpush1.bf16.xpose.msra.mxu0 %v1478
        %1485 = vmatprep.subr.bf16.mxu0 0
        %1486 = vmatpush1.bf16.xpose.msra.mxu0 %v1481
        %1487 = vmatprep.subr.bf16.mxu0 0
        %1488 = vmatpush1.bf16.xpose.msra.mxu0 0
        %1489 = vmatprep.subr.bf16.mxu0 0
        %1490 = vmatpush1.bf16.xpose.msra.mxu0 0
        %1491 = vmatprep.subr.bf16.mxu0 0
        %1492 = vmatpush1.bf16.xpose.msra.mxu0 0
        %1493 = vmatprep.subr.bf16.mxu0 0
        %1494 = vmatpush1.bf16.xpose.msra.mxu0 0
        %1495 = vmatprep.subr.bf16.mxu0 0
        %1496 = vmatpush1.bf16.xpose.msra.mxu0 0
        %1497 = vmatprep.subr.bf16.mxu0 0
        %1498 = vmatpush1.bf16.xpose.msra.mxu0 0
        %1499 = vmatprep.subr.bf16.mxu0 0
        %1500 = vmatpush1.bf16.xpose.msra.mxu0 0
        %1501 = vmatprep.subr.bf16.mxu0 0
        %1502 = vmatpush1.bf16.xpose.msra.mxu0 0
        %1503 = vmatprep.subr.bf16.mxu0 0
        %1504 = vmatpush1.bf16.xpose.msra.mxu0 0
        %1505 = vmatprep.subr.bf16.mxu0 0
        %1506 = vmatpush1.bf16.xpose.msra.mxu0 0
        %1507 = vmatprep.subr.bf16.mxu0 0
        %1508 = vmatpush1.bf16.xpose.msra.mxu0 0
        %1509 = vmatprep.subr.bf16.mxu0 0
        %1510 = vmatpush1.bf16.xpose.msra.mxu0 0
        %1511 = vmatprep.subr.bf16.mxu0 0
        %1512 = vmatpush1.bf16.xpose.msra.mxu0 0
        %1513 = vmatprep.subr.bf16.mxu0 0
        %1514 = vmatpush1.bf16.xpose.msra.mxu0 0
        %1515 = vmatprep.mubr.bf16.mxu0 0
        %1516 = vmatmul.mubr.bf16.gmra.mrb[0].mxu0 %v1475
        %v1517 = vpop.f32.mrb[0].mxu0
        %v1518 = vadd.f32 0.0, %v1517
        %v1519 = vpop.f32.mrb[0].mxu0
        %v1520 = vpop.f32.mrb[0].mxu0
        %v1521 = vadd.f32 0.0, %v1520
        %v1522 = vpop.f32.mrb[0].mxu0
        %1523 = vdwg.mxu0
        %v1525 = vsel %vm1347, %v1386, 0
        %v1528 = vsel %vm1347, %v1396, 0
        %v1531 = vsel %vm1347, %v1397, 0
        %1533 = vmatprep.subr.bf16.mxu0 0
        %1534 = vmatpush1.bf16.xpose.msra.mxu0 %v1528
        %1535 = vmatprep.subr.bf16.mxu0 0
        %1536 = vmatpush1.bf16.xpose.msra.mxu0 %v1531
        %1537 = vmatprep.subr.bf16.mxu0 0
        %1538 = vmatpush1.bf16.xpose.msra.mxu0 0
        %1539 = vmatprep.subr.bf16.mxu0 0
        %1540 = vmatpush1.bf16.xpose.msra.mxu0 0
        %1541 = vmatprep.subr.bf16.mxu0 0
        %1542 = vmatpush1.bf16.xpose.msra.mxu0 0
        %1543 = vmatprep.subr.bf16.mxu0 0
        %1544 = vmatpush1.bf16.xpose.msra.mxu0 0
        %1545 = vmatprep.subr.bf16.mxu0 0
        %1546 = vmatpush1.bf16.xpose.msra.mxu0 0
        %1547 = vmatprep.subr.bf16.mxu0 0
        %1548 = vmatpush1.bf16.xpose.msra.mxu0 0
        %1549 = vmatprep.subr.bf16.mxu0 0
        %1550 = vmatpush1.bf16.xpose.msra.mxu0 0
        %1551 = vmatprep.subr.bf16.mxu0 0
        %1552 = vmatpush1.bf16.xpose.msra.mxu0 0
        %1553 = vmatprep.subr.bf16.mxu0 0
        %1554 = vmatpush1.bf16.xpose.msra.mxu0 0
        %1555 = vmatprep.subr.bf16.mxu0 0
        %1556 = vmatpush1.bf16.xpose.msra.mxu0 0
        %1557 = vmatprep.subr.bf16.mxu0 0
        %1558 = vmatpush1.bf16.xpose.msra.mxu0 0
        %1559 = vmatprep.subr.bf16.mxu0 0
        %1560 = vmatpush1.bf16.xpose.msra.mxu0 0
        %1561 = vmatprep.subr.bf16.mxu0 0
        %1562 = vmatpush1.bf16.xpose.msra.mxu0 0
        %1563 = vmatprep.subr.bf16.mxu0 0
        %1564 = vmatpush1.bf16.xpose.msra.mxu0 0
        %1565 = vmatprep.mubr.bf16.mxu0 0
        %1566 = vmatmul.mubr.bf16.gmra.mrb[0].mxu0 %v1525
        %v1567 = vpop.f32.mrb[0].mxu0
        %v1568 = vadd.f32 0.0, %v1567
        %v1569 = vpop.f32.mrb[0].mxu0
        %v1570 = vpop.f32.mrb[0].mxu0
        %v1571 = vadd.f32 0.0, %v1570
        %v1572 = vpop.f32.mrb[0].mxu0
        %1573 = vdwg.mxu0
        %v1575 = vsel %vm1347, %v1387, 0
        %v1578 = vsel %vm1347, %v1398, 0
        %v1581 = vsel %vm1347, %v1399, 0
        %1583 = vmatprep.subr.bf16.mxu0 0
        %1584 = vmatpush1.bf16.xpose.msra.mxu0 %v1578
        %1585 = vmatprep.subr.bf16.mxu0 0
        %1586 = vmatpush1.bf16.xpose.msra.mxu0 %v1581
        %1587 = vmatprep.subr.bf16.mxu0 0
        %1588 = vmatpush1.bf16.xpose.msra.mxu0 0
        %1589 = vmatprep.subr.bf16.mxu0 0
        %1590 = vmatpush1.bf16.xpose.msra.mxu0 0
        %1591 = vmatprep.subr.bf16.mxu0 0
        %1592 = vmatpush1.bf16.xpose.msra.mxu0 0
        %1593 = vmatprep.subr.bf16.mxu0 0
        %1594 = vmatpush1.bf16.xpose.msra.mxu0 0
        %1595 = vmatprep.subr.bf16.mxu0 0
        %1596 = vmatpush1.bf16.xpose.msra.mxu0 0
        %1597 = vmatprep.subr.bf16.mxu0 0
        %1598 = vmatpush1.bf16.xpose.msra.mxu0 0
        %1599 = vmatprep.subr.bf16.mxu0 0
        %1600 = vmatpush1.bf16.xpose.msra.mxu0 0
        %1601 = vmatprep.subr.bf16.mxu0 0
        %1602 = vmatpush1.bf16.xpose.msra.mxu0 0
        %1603 = vmatprep.subr.bf16.mxu0 0
        %1604 = vmatpush1.bf16.xpose.msra.mxu0 0
        %1605 = vmatprep.subr.bf16.mxu0 0
        %1606 = vmatpush1.bf16.xpose.msra.mxu0 0
        %1607 = vmatprep.subr.bf16.mxu0 0
        %1608 = vmatpush1.bf16.xpose.msra.mxu0 0
        %1609 = vmatprep.subr.bf16.mxu0 0
        %1610 = vmatpush1.bf16.xpose.msra.mxu0 0
        %1611 = vmatprep.subr.bf16.mxu0 0
        %1612 = vmatpush1.bf16.xpose.msra.mxu0 0
        %1613 = vmatprep.subr.bf16.mxu0 0
        %1614 = vmatpush1.bf16.xpose.msra.mxu0 0
        %1615 = vmatprep.mubr.bf16.mxu0 0
        %1616 = vmatmul.mubr.bf16.gmra.mrb[0].mxu0 %v1575
        %v1617 = vpop.f32.mrb[0].mxu0
        %v1618 = vadd.f32 0.0, %v1617
        %v1619 = vpop.f32.mrb[0].mxu0
        %v1620 = vpop.f32.mrb[0].mxu0
        %v1621 = vadd.f32 0.0, %v1620
        %v1622 = vpop.f32.mrb[0].mxu0
        %1623 = vdwg.mxu0
        %v1625 = vsel %vm1347, %v1388, 0
        %v1628 = vsel %vm1347, %v1400, 0
        %v1631 = vsel %vm1347, %v1401, 0
        %1633 = vmatprep.subr.bf16.mxu0 0
        %1634 = vmatpush1.bf16.xpose.msra.mxu0 %v1628
        %1635 = vmatprep.subr.bf16.mxu0 0
        %1636 = vmatpush1.bf16.xpose.msra.mxu0 %v1631
        %1637 = vmatprep.subr.bf16.mxu0 0
        %1638 = vmatpush1.bf16.xpose.msra.mxu0 0
        %1639 = vmatprep.subr.bf16.mxu0 0
        %1640 = vmatpush1.bf16.xpose.msra.mxu0 0
        %1641 = vmatprep.subr.bf16.mxu0 0
        %1642 = vmatpush1.bf16.xpose.msra.mxu0 0
        %1643 = vmatprep.subr.bf16.mxu0 0
        %1644 = vmatpush1.bf16.xpose.msra.mxu0 0
        %1645 = vmatprep.subr.bf16.mxu0 0
        %1646 = vmatpush1.bf16.xpose.msra.mxu0 0
        %1647 = vmatprep.subr.bf16.mxu0 0
        %1648 = vmatpush1.bf16.xpose.msra.mxu0 0
        %1649 = vmatprep.subr.bf16.mxu0 0
        %1650 = vmatpush1.bf16.xpose.msra.mxu0 0
        %1651 = vmatprep.subr.bf16.mxu0 0
        %1652 = vmatpush1.bf16.xpose.msra.mxu0 0
        %1653 = vmatprep.subr.bf16.mxu0 0
        %1654 = vmatpush1.bf16.xpose.msra.mxu0 0
        %1655 = vmatprep.subr.bf16.mxu0 0
        %1656 = vmatpush1.bf16.xpose.msra.mxu0 0
        %1657 = vmatprep.subr.bf16.mxu0 0
        %1658 = vmatpush1.bf16.xpose.msra.mxu0 0
        %1659 = vmatprep.subr.bf16.mxu0 0
        %1660 = vmatpush1.bf16.xpose.msra.mxu0 0
        %1661 = vmatprep.subr.bf16.mxu0 0
        %1662 = vmatpush1.bf16.xpose.msra.mxu0 0
        %1663 = vmatprep.subr.bf16.mxu0 0
        %1664 = vmatpush1.bf16.xpose.msra.mxu0 0
        %1665 = vmatprep.mubr.bf16.mxu0 0
        %1666 = vmatmul.mubr.bf16.gmra.mrb[0].mxu0 %v1625
        %v1667 = vpop.f32.mrb[0].mxu0
        %v1668 = vadd.f32 0.0, %v1667
        %v1669 = vpop.f32.mrb[0].mxu0
        %v1670 = vpop.f32.mrb[0].mxu0
        %v1671 = vadd.f32 0.0, %v1670
        %v1672 = vpop.f32.mrb[0].mxu0
        %1673 = vdwg.mxu0
        %v1675 = vsel %vm1347, %v1389, 0
        %v1678 = vsel %vm1347, %v1402, 0
        %v1681 = vsel %vm1347, %v1403, 0
        %1683 = vmatprep.subr.bf16.mxu0 0
        %1684 = vmatpush1.bf16.xpose.msra.mxu0 %v1678
        %1685 = vmatprep.subr.bf16.mxu0 0
        %1686 = vmatpush1.bf16.xpose.msra.mxu0 %v1681
        %1687 = vmatprep.subr.bf16.mxu0 0
        %1688 = vmatpush1.bf16.xpose.msra.mxu0 0
        %1689 = vmatprep.subr.bf16.mxu0 0
        %1690 = vmatpush1.bf16.xpose.msra.mxu0 0
        %1691 = vmatprep.subr.bf16.mxu0 0
        %1692 = vmatpush1.bf16.xpose.msra.mxu0 0
        %1693 = vmatprep.subr.bf16.mxu0 0
        %1694 = vmatpush1.bf16.xpose.msra.mxu0 0
        %1695 = vmatprep.subr.bf16.mxu0 0
        %1696 = vmatpush1.bf16.xpose.msra.mxu0 0
        %1697 = vmatprep.subr.bf16.mxu0 0
        %1698 = vmatpush1.bf16.xpose.msra.mxu0 0
        %1699 = vmatprep.subr.bf16.mxu0 0
        %1700 = vmatpush1.bf16.xpose.msra.mxu0 0
        %1701 = vmatprep.subr.bf16.mxu0 0
        %1702 = vmatpush1.bf16.xpose.msra.mxu0 0
        %1703 = vmatprep.subr.bf16.mxu0 0
        %1704 = vmatpush1.bf16.xpose.msra.mxu0 0
        %1705 = vmatprep.subr.bf16.mxu0 0
        %1706 = vmatpush1.bf16.xpose.msra.mxu0 0
        %1707 = vmatprep.subr.bf16.mxu0 0
        %1708 = vmatpush1.bf16.xpose.msra.mxu0 0
        %1709 = vmatprep.subr.bf16.mxu0 0
        %1710 = vmatpush1.bf16.xpose.msra.mxu0 0
        %1711 = vmatprep.subr.bf16.mxu0 0
        %1712 = vmatpush1.bf16.xpose.msra.mxu0 0
        %1713 = vmatprep.subr.bf16.mxu0 0
        %1714 = vmatpush1.bf16.xpose.msra.mxu0 0
        %1715 = vmatprep.mubr.bf16.mxu0 0
        %1716 = vmatmul.mubr.bf16.gmra.mrb[0].mxu0 %v1675
        %v1717 = vpop.f32.mrb[0].mxu0
        %v1718 = vadd.f32 0.0, %v1717
        %v1719 = vpop.f32.mrb[0].mxu0
        %v1720 = vpop.f32.mrb[0].mxu0
        %v1721 = vadd.f32 0.0, %v1720
        %v1722 = vpop.f32.mrb[0].mxu0
        %1723 = vdwg.mxu0
        %v1725 = vsel %vm1347, %v1390, 0
        %v1728 = vsel %vm1347, %v1404, 0
        %v1731 = vsel %vm1347, %v1405, 0
        %1733 = vmatprep.subr.bf16.mxu0 0
        %1734 = vmatpush1.bf16.xpose.msra.mxu0 %v1728
        %1735 = vmatprep.subr.bf16.mxu0 0
        %1736 = vmatpush1.bf16.xpose.msra.mxu0 %v1731
        %1737 = vmatprep.subr.bf16.mxu0 0
        %1738 = vmatpush1.bf16.xpose.msra.mxu0 0
        %1739 = vmatprep.subr.bf16.mxu0 0
        %1740 = vmatpush1.bf16.xpose.msra.mxu0 0
        %1741 = vmatprep.subr.bf16.mxu0 0
        %1742 = vmatpush1.bf16.xpose.msra.mxu0 0
        %1743 = vmatprep.subr.bf16.mxu0 0
        %1744 = vmatpush1.bf16.xpose.msra.mxu0 0
        %1745 = vmatprep.subr.bf16.mxu0 0
        %1746 = vmatpush1.bf16.xpose.msra.mxu0 0
        %1747 = vmatprep.subr.bf16.mxu0 0
        %1748 = vmatpush1.bf16.xpose.msra.mxu0 0
        %1749 = vmatprep.subr.bf16.mxu0 0
        %1750 = vmatpush1.bf16.xpose.msra.mxu0 0
        %1751 = vmatprep.subr.bf16.mxu0 0
        %1752 = vmatpush1.bf16.xpose.msra.mxu0 0
        %1753 = vmatprep.subr.bf16.mxu0 0
        %1754 = vmatpush1.bf16.xpose.msra.mxu0 0
        %1755 = vmatprep.subr.bf16.mxu0 0
        %1756 = vmatpush1.bf16.xpose.msra.mxu0 0
        %1757 = vmatprep.subr.bf16.mxu0 0
        %1758 = vmatpush1.bf16.xpose.msra.mxu0 0
        %1759 = vmatprep.subr.bf16.mxu0 0
        %1760 = vmatpush1.bf16.xpose.msra.mxu0 0
        %1761 = vmatprep.subr.bf16.mxu0 0
        %1762 = vmatpush1.bf16.xpose.msra.mxu0 0
        %1763 = vmatprep.subr.bf16.mxu0 0
        %1764 = vmatpush1.bf16.xpose.msra.mxu0 0
        %1765 = vmatprep.mubr.bf16.mxu0 0
        %1766 = vmatmul.mubr.bf16.gmra.mrb[0].mxu0 %v1725
        %v1767 = vpop.f32.mrb[0].mxu0
        %v1768 = vadd.f32 0.0, %v1767
        %v1769 = vpop.f32.mrb[0].mxu0
        %v1770 = vpop.f32.mrb[0].mxu0
        %v1771 = vadd.f32 0.0, %v1770
        %v1772 = vpop.f32.mrb[0].mxu0
        %1773 = vdwg.mxu0
        %v1775 = vsel %vm1347, %v1391, 0
        %v1778 = vsel %vm1347, %v1406, 0
        %v1781 = vsel %vm1347, %v1407, 0
        %1783 = vmatprep.subr.bf16.mxu0 0
        %1784 = vmatpush1.bf16.xpose.msra.mxu0 %v1778
        %1785 = vmatprep.subr.bf16.mxu0 0
        %1786 = vmatpush1.bf16.xpose.msra.mxu0 %v1781
        %1787 = vmatprep.subr.bf16.mxu0 0
        %1788 = vmatpush1.bf16.xpose.msra.mxu0 0
        %1789 = vmatprep.subr.bf16.mxu0 0
        %1790 = vmatpush1.bf16.xpose.msra.mxu0 0
        %1791 = vmatprep.subr.bf16.mxu0 0
        %1792 = vmatpush1.bf16.xpose.msra.mxu0 0
        %1793 = vmatprep.subr.bf16.mxu0 0
        %1794 = vmatpush1.bf16.xpose.msra.mxu0 0
        %1795 = vmatprep.subr.bf16.mxu0 0
        %1796 = vmatpush1.bf16.xpose.msra.mxu0 0
        %1797 = vmatprep.subr.bf16.mxu0 0
        %1798 = vmatpush1.bf16.xpose.msra.mxu0 0
        %1799 = vmatprep.subr.bf16.mxu0 0
        %1800 = vmatpush1.bf16.xpose.msra.mxu0 0
        %1801 = vmatprep.subr.bf16.mxu0 0
        %1802 = vmatpush1.bf16.xpose.msra.mxu0 0
        %1803 = vmatprep.subr.bf16.mxu0 0
        %1804 = vmatpush1.bf16.xpose.msra.mxu0 0
        %1805 = vmatprep.subr.bf16.mxu0 0
        %1806 = vmatpush1.bf16.xpose.msra.mxu0 0
        %1807 = vmatprep.subr.bf16.mxu0 0
        %1808 = vmatpush1.bf16.xpose.msra.mxu0 0
        %1809 = vmatprep.subr.bf16.mxu0 0
        %1810 = vmatpush1.bf16.xpose.msra.mxu0 0
        %1811 = vmatprep.subr.bf16.mxu0 0
        %1812 = vmatpush1.bf16.xpose.msra.mxu0 0
        %1813 = vmatprep.subr.bf16.mxu0 0
        %1814 = vmatpush1.bf16.xpose.msra.mxu0 0
        %1815 = vmatprep.mubr.bf16.mxu0 0
        %1816 = vmatmul.mubr.bf16.gmra.mrb[0].mxu0 %v1775
        %v1817 = vpop.f32.mrb[0].mxu0
        %v1818 = vadd.f32 0.0, %v1817
        %v1819 = vpop.f32.mrb[0].mxu0
        %v1820 = vpop.f32.mrb[0].mxu0
        %v1821 = vadd.f32 0.0, %v1820
        %v1822 = vpop.f32.mrb[0].mxu0
        %1823 = vdwg.mxu0
        %v1824 = vsel %vm1347, %v1468, -inf
        %1825 = vmax.xlane.f32.xlu0 %v1824
        %v1826 = vpop.xlane.xlu0 %1825
        %v1827 = vsel %vm1347, %v1471, -inf
        %1828 = vmax.xlane.f32.xlu0 %v1827
        %v1829 = vpop.xlane.xlu0 %1828
        %v1830 = vsel %vm1347, %v1518, -inf
        %1831 = vmax.xlane.f32.xlu0 %v1830
        %v1832 = vpop.xlane.xlu0 %1831
        %v1833 = vsel %vm1347, %v1521, -inf
        %1834 = vmax.xlane.f32.xlu0 %v1833
        %v1835 = vpop.xlane.xlu0 %1834
        %v1836 = vsel %vm1347, %v1568, -inf
        %1837 = vmax.xlane.f32.xlu0 %v1836
        %v1838 = vpop.xlane.xlu0 %1837
        %v1839 = vsel %vm1347, %v1571, -inf
        %1840 = vmax.xlane.f32.xlu0 %v1839
        %v1841 = vpop.xlane.xlu0 %1840
        %v1842 = vsel %vm1347, %v1618, -inf
        %1843 = vmax.xlane.f32.xlu0 %v1842
        %v1844 = vpop.xlane.xlu0 %1843
        %v1845 = vsel %vm1347, %v1621, -inf
        %1846 = vmax.xlane.f32.xlu0 %v1845
        %v1847 = vpop.xlane.xlu0 %1846
        %v1848 = vsel %vm1347, %v1668, -inf
        %1849 = vmax.xlane.f32.xlu0 %v1848
        %v1850 = vpop.xlane.xlu0 %1849
        %v1851 = vsel %vm1347, %v1671, -inf
        %1852 = vmax.xlane.f32.xlu0 %v1851
        %v1853 = vpop.xlane.xlu0 %1852
        %v1854 = vsel %vm1347, %v1718, -inf
        %1855 = vmax.xlane.f32.xlu0 %v1854
        %v1856 = vpop.xlane.xlu0 %1855
        %v1857 = vsel %vm1347, %v1721, -inf
        %1858 = vmax.xlane.f32.xlu0 %v1857
        %v1859 = vpop.xlane.xlu0 %1858
        %v1860 = vsel %vm1347, %v1768, -inf
        %1861 = vmax.xlane.f32.xlu0 %v1860
        %v1862 = vpop.xlane.xlu0 %1861
        %v1863 = vsel %vm1347, %v1771, -inf
        %1864 = vmax.xlane.f32.xlu0 %v1863
        %v1865 = vpop.xlane.xlu0 %1864
        %v1866 = vsel %vm1347, %v1818, -inf
        %1867 = vmax.xlane.f32.xlu0 %v1866
        %v1868 = vpop.xlane.xlu0 %1867
        %v1869 = vsel %vm1347, %v1821, -inf
        %1870 = vmax.xlane.f32.xlu0 %v1869
        %v1871 = vpop.xlane.xlu0 %1870
        %v1872 = vsub.f32 %v1468, %v1826
        %v1873 = vsub.f32 %v1471, %v1829
        %v1874 = vsub.f32 %v1518, %v1832
        %v1875 = vsub.f32 %v1521, %v1835
        %v1876 = vsub.f32 %v1568, %v1838
        %v1877 = vsub.f32 %v1571, %v1841
        %v1878 = vsub.f32 %v1618, %v1844
        %v1879 = vsub.f32 %v1621, %v1847
        %v1880 = vsub.f32 %v1668, %v1850
        %v1881 = vsub.f32 %v1671, %v1853
        %v1882 = vsub.f32 %v1718, %v1856
        %v1883 = vsub.f32 %v1721, %v1859
        %v1884 = vsub.f32 %v1768, %v1862
        %v1885 = vsub.f32 %v1771, %v1865
        %v1886 = vsub.f32 %v1818, %v1868
        %v1887 = vsub.f32 %v1821, %v1871
        %v1888 = vmul.f32 %v1872, 1.442695
        %v1889 = vpow.pop %v1888
        %v1890 = vmul.f32 %v1873, 1.442695
        %v1891 = vpow.pop %v1890
        %v1892 = vmul.f32 %v1874, 1.442695
        %v1893 = vpow.pop %v1892
        %v1894 = vmul.f32 %v1875, 1.442695
        %v1895 = vpow.pop %v1894
        %v1896 = vmul.f32 %v1876, 1.442695
        %v1897 = vpow.pop %v1896
        %v1898 = vmul.f32 %v1877, 1.442695
        %v1899 = vpow.pop %v1898
        %v1900 = vmul.f32 %v1878, 1.442695
        %v1901 = vpow.pop %v1900
        %v1902 = vmul.f32 %v1879, 1.442695
        %v1903 = vpow.pop %v1902
        %v1904 = vmul.f32 %v1880, 1.442695
        %v1905 = vpow.pop %v1904
        %v1906 = vmul.f32 %v1881, 1.442695
        %v1907 = vpow.pop %v1906
        %v1908 = vmul.f32 %v1882, 1.442695
        %v1909 = vpow.pop %v1908
        %v1910 = vmul.f32 %v1883, 1.442695
        %v1911 = vpow.pop %v1910
        %v1912 = vmul.f32 %v1884, 1.442695
        %v1913 = vpow.pop %v1912
        %v1914 = vmul.f32 %v1885, 1.442695
        %v1915 = vpow.pop %v1914
        %v1916 = vmul.f32 %v1886, 1.442695
        %v1917 = vpow.pop %v1916
        %v1918 = vmul.f32 %v1887, 1.442695
        %v1919 = vpow.pop %v1918
        %v1920 = vsel %vm1347, %v1889, 0.0
        %1921 = vadd.xlane.f32.xlu0 %v1920
        %v1922 = vpop.xlane.xlu0 %1921
        %v1923 = vsel %vm1347, %v1891, 0.0
        %1924 = vadd.xlane.f32.xlu0 %v1923
        %v1925 = vpop.xlane.xlu0 %1924
        %v1926 = vsel %vm1347, %v1893, 0.0
        %1927 = vadd.xlane.f32.xlu0 %v1926
        %v1928 = vpop.xlane.xlu0 %1927
        %v1929 = vsel %vm1347, %v1895, 0.0
        %1930 = vadd.xlane.f32.xlu0 %v1929
        %v1931 = vpop.xlane.xlu0 %1930
        %v1932 = vsel %vm1347, %v1897, 0.0
        %1933 = vadd.xlane.f32.xlu0 %v1932
        %v1934 = vpop.xlane.xlu0 %1933
        %v1935 = vsel %vm1347, %v1899, 0.0
        %1936 = vadd.xlane.f32.xlu0 %v1935
        %v1937 = vpop.xlane.xlu0 %1936
        %v1938 = vsel %vm1347, %v1901, 0.0
        %1939 = vadd.xlane.f32.xlu0 %v1938
        %v1940 = vpop.xlane.xlu0 %1939
        %v1941 = vsel %vm1347, %v1903, 0.0
        %1942 = vadd.xlane.f32.xlu0 %v1941
        %v1943 = vpop.xlane.xlu0 %1942
        %v1944 = vsel %vm1347, %v1905, 0.0
        %1945 = vadd.xlane.f32.xlu0 %v1944
        %v1946 = vpop.xlane.xlu0 %1945
        %v1947 = vsel %vm1347, %v1907, 0.0
        %1948 = vadd.xlane.f32.xlu0 %v1947
        %v1949 = vpop.xlane.xlu0 %1948
        %v1950 = vsel %vm1347, %v1909, 0.0
        %1951 = vadd.xlane.f32.xlu0 %v1950
        %v1952 = vpop.xlane.xlu0 %1951
        %v1953 = vsel %vm1347, %v1911, 0.0
        %1954 = vadd.xlane.f32.xlu0 %v1953
        %v1955 = vpop.xlane.xlu0 %1954
        %v1956 = vsel %vm1347, %v1913, 0.0
        %1957 = vadd.xlane.f32.xlu0 %v1956
        %v1958 = vpop.xlane.xlu0 %1957
        %v1959 = vsel %vm1347, %v1915, 0.0
        %1960 = vadd.xlane.f32.xlu0 %v1959
        %v1961 = vpop.xlane.xlu0 %1960
        %v1962 = vsel %vm1347, %v1917, 0.0
        %1963 = vadd.xlane.f32.xlu0 %v1962
        %v1964 = vpop.xlane.xlu0 %1963
        %v1965 = vsel %vm1347, %v1919, 0.0
        %1966 = vadd.xlane.f32.xlu0 %v1965
        %v1967 = vpop.xlane.xlu0 %1966
        %v1968 = vrcp.pop %v1922
        %v1969 = vrcp.pop %v1925
        %v1970 = vrcp.pop %v1928
        %v1971 = vrcp.pop %v1931
        %v1972 = vrcp.pop %v1934
        %v1973 = vrcp.pop %v1937
        %v1974 = vrcp.pop %v1940
        %v1975 = vrcp.pop %v1943
        %v1976 = vrcp.pop %v1946
        %v1977 = vrcp.pop %v1949
        %v1978 = vrcp.pop %v1952
        %v1979 = vrcp.pop %v1955
        %v1980 = vrcp.pop %v1958
        %v1981 = vrcp.pop %v1961
        %v1982 = vrcp.pop %v1964
        %v1983 = vrcp.pop %v1967
        %v1984 = vmul.f32 %v1889, %v1968
        %v1985 = vmul.f32 %v1891, %v1969
        %v1986 = vmul.f32 %v1893, %v1970
        %v1987 = vmul.f32 %v1895, %v1971
        %v1988 = vmul.f32 %v1897, %v1972
        %v1989 = vmul.f32 %v1899, %v1973
        %v1990 = vmul.f32 %v1901, %v1974
        %v1991 = vmul.f32 %v1903, %v1975
        %v1992 = vmul.f32 %v1905, %v1976
        %v1993 = vmul.f32 %v1907, %v1977
        %v1994 = vmul.f32 %v1909, %v1978
        %v1995 = vmul.f32 %v1911, %v1979
        %v1996 = vmul.f32 %v1913, %v1980
        %v1997 = vmul.f32 %v1915, %v1981
        %v1998 = vmul.f32 %v1917, %v1982
        %v1999 = vmul.f32 %v1919, %v1983
        %v2000 = vpack.c.bf16 %v1985, %v1984
        %v2001 = vpack.c.bf16 %v1987, %v1986
        %v2002 = vpack.c.bf16 %v1989, %v1988
        %v2003 = vpack.c.bf16 %v1991, %v1990
        %v2004 = vpack.c.bf16 %v1993, %v1992
        %v2005 = vpack.c.bf16 %v1995, %v1994
        %v2006 = vpack.c.bf16 %v1997, %v1996
        %v2007 = vpack.c.bf16 %v1999, %v1998
        %v2009 = vsel %vm1347, %v2000, 0
        %2011 = vmatprep.subr.bf16.mxu0 0
        %2012 = vmatpush1.bf16.msra.mxu0 %v1408
        %2013 = vmatprep.subr.bf16.mxu0 0
        %2014 = vmatpush1.bf16.msra.mxu0 %v1409
        %2015 = vmatprep.subr.bf16.mxu0 0
        %2016 = vmatpush1.bf16.msra.mxu0 0
        %2017 = vmatprep.subr.bf16.mxu0 0
        %2018 = vmatpush1.bf16.msra.mxu0 0
        %2019 = vmatprep.subr.bf16.mxu0 0
        %2020 = vmatpush1.bf16.msra.mxu0 0
        %2021 = vmatprep.subr.bf16.mxu0 0
        %2022 = vmatpush1.bf16.msra.mxu0 0
        %2023 = vmatprep.subr.bf16.mxu0 0
        %2024 = vmatpush1.bf16.msra.mxu0 0
        %2025 = vmatprep.subr.bf16.mxu0 0
        %2026 = vmatpush1.bf16.msra.mxu0 0
        %2027 = vmatprep.subr.bf16.mxu0 0
        %2028 = vmatpush1.bf16.msra.mxu0 0
        %2029 = vmatprep.subr.bf16.mxu0 0
        %2030 = vmatpush1.bf16.msra.mxu0 0
        %2031 = vmatprep.subr.bf16.mxu0 0
        %2032 = vmatpush1.bf16.msra.mxu0 0
        %2033 = vmatprep.subr.bf16.mxu0 0
        %2034 = vmatpush1.bf16.msra.mxu0 0
        %2035 = vmatprep.subr.bf16.mxu0 0
        %2036 = vmatpush1.bf16.msra.mxu0 0
        %2037 = vmatprep.subr.bf16.mxu0 0
        %2038 = vmatpush1.bf16.msra.mxu0 0
        %2039 = vmatprep.subr.bf16.mxu0 0
        %2040 = vmatpush1.bf16.msra.mxu0 0
        %2041 = vmatprep.subr.bf16.mxu0 0
        %2042 = vmatpush1.bf16.msra.mxu0 0
        %2043 = vmatprep.mubr.bf16.mxu0 0
        %2044 = vmatmul.mubr.bf16.gmra.mrb[0].mxu0 %v2009
        %v2045 = vpop.f32.mrb[0].mxu0
        %v2046 = vadd.f32 0.0, %v2045
        %v2047 = vpop.f32.mrb[0].mxu0
        %v2048 = vpop.f32.mrb[0].mxu0
        %v2049 = vadd.f32 0.0, %v2048
        %v2050 = vpop.f32.mrb[0].mxu0
        %2051 = vdwg.mxu0
        %v2053 = vsel %vm1347, %v2001, 0
        %2055 = vmatprep.subr.bf16.mxu0 0
        %2056 = vmatpush1.bf16.msra.mxu0 %v1410
        %2057 = vmatprep.subr.bf16.mxu0 0
        %2058 = vmatpush1.bf16.msra.mxu0 %v1411
        %2059 = vmatprep.subr.bf16.mxu0 0
        %2060 = vmatpush1.bf16.msra.mxu0 0
        %2061 = vmatprep.subr.bf16.mxu0 0
        %2062 = vmatpush1.bf16.msra.mxu0 0
        %2063 = vmatprep.subr.bf16.mxu0 0
        %2064 = vmatpush1.bf16.msra.mxu0 0
        %2065 = vmatprep.subr.bf16.mxu0 0
        %2066 = vmatpush1.bf16.msra.mxu0 0
        %2067 = vmatprep.subr.bf16.mxu0 0
        %2068 = vmatpush1.bf16.msra.mxu0 0
        %2069 = vmatprep.subr.bf16.mxu0 0
        %2070 = vmatpush1.bf16.msra.mxu0 0
        %2071 = vmatprep.subr.bf16.mxu0 0
        %2072 = vmatpush1.bf16.msra.mxu0 0
        %2073 = vmatprep.subr.bf16.mxu0 0
        %2074 = vmatpush1.bf16.msra.mxu0 0
        %2075 = vmatprep.subr.bf16.mxu0 0
        %2076 = vmatpush1.bf16.msra.mxu0 0
        %2077 = vmatprep.subr.bf16.mxu0 0
        %2078 = vmatpush1.bf16.msra.mxu0 0
        %2079 = vmatprep.subr.bf16.mxu0 0
        %2080 = vmatpush1.bf16.msra.mxu0 0
        %2081 = vmatprep.subr.bf16.mxu0 0
        %2082 = vmatpush1.bf16.msra.mxu0 0
        %2083 = vmatprep.subr.bf16.mxu0 0
        %2084 = vmatpush1.bf16.msra.mxu0 0
        %2085 = vmatprep.subr.bf16.mxu0 0
        %2086 = vmatpush1.bf16.msra.mxu0 0
        %2087 = vmatprep.mubr.bf16.mxu0 0
        %2088 = vmatmul.mubr.bf16.gmra.mrb[0].mxu0 %v2053
        %v2089 = vpop.f32.mrb[0].mxu0
        %v2090 = vadd.f32 0.0, %v2089
        %v2091 = vpop.f32.mrb[0].mxu0
        %v2092 = vpop.f32.mrb[0].mxu0
        %v2093 = vadd.f32 0.0, %v2092
        %v2094 = vpop.f32.mrb[0].mxu0
        %2095 = vdwg.mxu0
        %v2097 = vsel %vm1347, %v2002, 0
        %2099 = vmatprep.subr.bf16.mxu0 0
        %2100 = vmatpush1.bf16.msra.mxu0 %v1412
        %2101 = vmatprep.subr.bf16.mxu0 0
        %2102 = vmatpush1.bf16.msra.mxu0 %v1413
        %2103 = vmatprep.subr.bf16.mxu0 0
        %2104 = vmatpush1.bf16.msra.mxu0 0
        %2105 = vmatprep.subr.bf16.mxu0 0
        %2106 = vmatpush1.bf16.msra.mxu0 0
        %2107 = vmatprep.subr.bf16.mxu0 0
        %2108 = vmatpush1.bf16.msra.mxu0 0
        %2109 = vmatprep.subr.bf16.mxu0 0
        %2110 = vmatpush1.bf16.msra.mxu0 0
        %2111 = vmatprep.subr.bf16.mxu0 0
        %2112 = vmatpush1.bf16.msra.mxu0 0
        %2113 = vmatprep.subr.bf16.mxu0 0
        %2114 = vmatpush1.bf16.msra.mxu0 0
        %2115 = vmatprep.subr.bf16.mxu0 0
        %2116 = vmatpush1.bf16.msra.mxu0 0
        %2117 = vmatprep.subr.bf16.mxu0 0
        %2118 = vmatpush1.bf16.msra.mxu0 0
        %2119 = vmatprep.subr.bf16.mxu0 0
        %2120 = vmatpush1.bf16.msra.mxu0 0
        %2121 = vmatprep.subr.bf16.mxu0 0
        %2122 = vmatpush1.bf16.msra.mxu0 0
        %2123 = vmatprep.subr.bf16.mxu0 0
        %2124 = vmatpush1.bf16.msra.mxu0 0
        %2125 = vmatprep.subr.bf16.mxu0 0
        %2126 = vmatpush1.bf16.msra.mxu0 0
        %2127 = vmatprep.subr.bf16.mxu0 0
        %2128 = vmatpush1.bf16.msra.mxu0 0
        %2129 = vmatprep.subr.bf16.mxu0 0
        %2130 = vmatpush1.bf16.msra.mxu0 0
        %2131 = vmatprep.mubr.bf16.mxu0 0
        %2132 = vmatmul.mubr.bf16.gmra.mrb[0].mxu0 %v2097
        %v2133 = vpop.f32.mrb[0].mxu0
        %v2134 = vadd.f32 0.0, %v2133
        %v2135 = vpop.f32.mrb[0].mxu0
        %v2136 = vpop.f32.mrb[0].mxu0
        %v2137 = vadd.f32 0.0, %v2136
        %v2138 = vpop.f32.mrb[0].mxu0
        %2139 = vdwg.mxu0
        %v2141 = vsel %vm1347, %v2003, 0
        %2143 = vmatprep.subr.bf16.mxu0 0
        %2144 = vmatpush1.bf16.msra.mxu0 %v1414
        %2145 = vmatprep.subr.bf16.mxu0 0
        %2146 = vmatpush1.bf16.msra.mxu0 %v1415
        %2147 = vmatprep.subr.bf16.mxu0 0
        %2148 = vmatpush1.bf16.msra.mxu0 0
        %2149 = vmatprep.subr.bf16.mxu0 0
        %2150 = vmatpush1.bf16.msra.mxu0 0
        %2151 = vmatprep.subr.bf16.mxu0 0
        %2152 = vmatpush1.bf16.msra.mxu0 0
        %2153 = vmatprep.subr.bf16.mxu0 0
        %2154 = vmatpush1.bf16.msra.mxu0 0
        %2155 = vmatprep.subr.bf16.mxu0 0
        %2156 = vmatpush1.bf16.msra.mxu0 0
        %2157 = vmatprep.subr.bf16.mxu0 0
        %2158 = vmatpush1.bf16.msra.mxu0 0
        %2159 = vmatprep.subr.bf16.mxu0 0
        %2160 = vmatpush1.bf16.msra.mxu0 0
        %2161 = vmatprep.subr.bf16.mxu0 0
        %2162 = vmatpush1.bf16.msra.mxu0 0
        %2163 = vmatprep.subr.bf16.mxu0 0
        %2164 = vmatpush1.bf16.msra.mxu0 0
        %2165 = vmatprep.subr.bf16.mxu0 0
        %2166 = vmatpush1.bf16.msra.mxu0 0
        %2167 = vmatprep.subr.bf16.mxu0 0
        %2168 = vmatpush1.bf16.msra.mxu0 0
        %2169 = vmatprep.subr.bf16.mxu0 0
        %2170 = vmatpush1.bf16.msra.mxu0 0
        %2171 = vmatprep.subr.bf16.mxu0 0
        %2172 = vmatpush1.bf16.msra.mxu0 0
        %2173 = vmatprep.subr.bf16.mxu0 0
        %2174 = vmatpush1.bf16.msra.mxu0 0
        %2175 = vmatprep.mubr.bf16.mxu0 0
        %2176 = vmatmul.mubr.bf16.gmra.mrb[0].mxu0 %v2141
        %v2177 = vpop.f32.mrb[0].mxu0
        %v2178 = vadd.f32 0.0, %v2177
        %v2179 = vpop.f32.mrb[0].mxu0
        %v2180 = vpop.f32.mrb[0].mxu0
        %v2181 = vadd.f32 0.0, %v2180
        %v2182 = vpop.f32.mrb[0].mxu0
        %2183 = vdwg.mxu0
        %v2185 = vsel %vm1347, %v2004, 0
        %2187 = vmatprep.subr.bf16.mxu0 0
        %2188 = vmatpush1.bf16.msra.mxu0 %v1416
        %2189 = vmatprep.subr.bf16.mxu0 0
        %2190 = vmatpush1.bf16.msra.mxu0 %v1417
        %2191 = vmatprep.subr.bf16.mxu0 0
        %2192 = vmatpush1.bf16.msra.mxu0 0
        %2193 = vmatprep.subr.bf16.mxu0 0
        %2194 = vmatpush1.bf16.msra.mxu0 0
        %2195 = vmatprep.subr.bf16.mxu0 0
        %2196 = vmatpush1.bf16.msra.mxu0 0
        %2197 = vmatprep.subr.bf16.mxu0 0
        %2198 = vmatpush1.bf16.msra.mxu0 0
        %2199 = vmatprep.subr.bf16.mxu0 0
        %2200 = vmatpush1.bf16.msra.mxu0 0
        %2201 = vmatprep.subr.bf16.mxu0 0
        %2202 = vmatpush1.bf16.msra.mxu0 0
        %2203 = vmatprep.subr.bf16.mxu0 0
        %2204 = vmatpush1.bf16.msra.mxu0 0
        %2205 = vmatprep.subr.bf16.mxu0 0
        %2206 = vmatpush1.bf16.msra.mxu0 0
        %2207 = vmatprep.subr.bf16.mxu0 0
        %2208 = vmatpush1.bf16.msra.mxu0 0
        %2209 = vmatprep.subr.bf16.mxu0 0
        %2210 = vmatpush1.bf16.msra.mxu0 0
        %2211 = vmatprep.subr.bf16.mxu0 0
        %2212 = vmatpush1.bf16.msra.mxu0 0
        %2213 = vmatprep.subr.bf16.mxu0 0
        %2214 = vmatpush1.bf16.msra.mxu0 0
        %2215 = vmatprep.subr.bf16.mxu0 0
        %2216 = vmatpush1.bf16.msra.mxu0 0
        %2217 = vmatprep.subr.bf16.mxu0 0
        %2218 = vmatpush1.bf16.msra.mxu0 0
        %2219 = vmatprep.mubr.bf16.mxu0 0
        %2220 = vmatmul.mubr.bf16.gmra.mrb[0].mxu0 %v2185
        %v2221 = vpop.f32.mrb[0].mxu0
        %v2222 = vadd.f32 0.0, %v2221
        %v2223 = vpop.f32.mrb[0].mxu0
        %v2224 = vpop.f32.mrb[0].mxu0
        %v2225 = vadd.f32 0.0, %v2224
        %v2226 = vpop.f32.mrb[0].mxu0
        %2227 = vdwg.mxu0
        %v2229 = vsel %vm1347, %v2005, 0
        %2231 = vmatprep.subr.bf16.mxu0 0
        %2232 = vmatpush1.bf16.msra.mxu0 %v1418
        %2233 = vmatprep.subr.bf16.mxu0 0
        %2234 = vmatpush1.bf16.msra.mxu0 %v1419
        %2235 = vmatprep.subr.bf16.mxu0 0
        %2236 = vmatpush1.bf16.msra.mxu0 0
        %2237 = vmatprep.subr.bf16.mxu0 0
        %2238 = vmatpush1.bf16.msra.mxu0 0
        %2239 = vmatprep.subr.bf16.mxu0 0
        %2240 = vmatpush1.bf16.msra.mxu0 0
        %2241 = vmatprep.subr.bf16.mxu0 0
        %2242 = vmatpush1.bf16.msra.mxu0 0
        %2243 = vmatprep.subr.bf16.mxu0 0
        %2244 = vmatpush1.bf16.msra.mxu0 0
        %2245 = vmatprep.subr.bf16.mxu0 0
        %2246 = vmatpush1.bf16.msra.mxu0 0
        %2247 = vmatprep.subr.bf16.mxu0 0
        %2248 = vmatpush1.bf16.msra.mxu0 0
        %2249 = vmatprep.subr.bf16.mxu0 0
        %2250 = vmatpush1.bf16.msra.mxu0 0
        %2251 = vmatprep.subr.bf16.mxu0 0
        %2252 = vmatpush1.bf16.msra.mxu0 0
        %2253 = vmatprep.subr.bf16.mxu0 0
        %2254 = vmatpush1.bf16.msra.mxu0 0
        %2255 = vmatprep.subr.bf16.mxu0 0
        %2256 = vmatpush1.bf16.msra.mxu0 0
        %2257 = vmatprep.subr.bf16.mxu0 0
        %2258 = vmatpush1.bf16.msra.mxu0 0
        %2259 = vmatprep.subr.bf16.mxu0 0
        %2260 = vmatpush1.bf16.msra.mxu0 0
        %2261 = vmatprep.subr.bf16.mxu0 0
        %2262 = vmatpush1.bf16.msra.mxu0 0
        %2263 = vmatprep.mubr.bf16.mxu0 0
        %2264 = vmatmul.mubr.bf16.gmra.mrb[0].mxu0 %v2229
        %v2265 = vpop.f32.mrb[0].mxu0
        %v2266 = vadd.f32 0.0, %v2265
        %v2267 = vpop.f32.mrb[0].mxu0
        %v2268 = vpop.f32.mrb[0].mxu0
        %v2269 = vadd.f32 0.0, %v2268
        %v2270 = vpop.f32.mrb[0].mxu0
        %2271 = vdwg.mxu0
        %v2273 = vsel %vm1347, %v2006, 0
        %2275 = vmatprep.subr.bf16.mxu0 0
        %2276 = vmatpush1.bf16.msra.mxu0 %v1420
        %2277 = vmatprep.subr.bf16.mxu0 0
        %2278 = vmatpush1.bf16.msra.mxu0 %v1421
        %2279 = vmatprep.subr.bf16.mxu0 0
        %2280 = vmatpush1.bf16.msra.mxu0 0
        %2281 = vmatprep.subr.bf16.mxu0 0
        %2282 = vmatpush1.bf16.msra.mxu0 0
        %2283 = vmatprep.subr.bf16.mxu0 0
        %2284 = vmatpush1.bf16.msra.mxu0 0
        %2285 = vmatprep.subr.bf16.mxu0 0
        %2286 = vmatpush1.bf16.msra.mxu0 0
        %2287 = vmatprep.subr.bf16.mxu0 0
        %2288 = vmatpush1.bf16.msra.mxu0 0
        %2289 = vmatprep.subr.bf16.mxu0 0
        %2290 = vmatpush1.bf16.msra.mxu0 0
        %2291 = vmatprep.subr.bf16.mxu0 0
        %2292 = vmatpush1.bf16.msra.mxu0 0
        %2293 = vmatprep.subr.bf16.mxu0 0
        %2294 = vmatpush1.bf16.msra.mxu0 0
        %2295 = vmatprep.subr.bf16.mxu0 0
        %2296 = vmatpush1.bf16.msra.mxu0 0
        %2297 = vmatprep.subr.bf16.mxu0 0
        %2298 = vmatpush1.bf16.msra.mxu0 0
        %2299 = vmatprep.subr.bf16.mxu0 0
        %2300 = vmatpush1.bf16.msra.mxu0 0
        %2301 = vmatprep.subr.bf16.mxu0 0
        %2302 = vmatpush1.bf16.msra.mxu0 0
        %2303 = vmatprep.subr.bf16.mxu0 0
        %2304 = vmatpush1.bf16.msra.mxu0 0
        %2305 = vmatprep.subr.bf16.mxu0 0
        %2306 = vmatpush1.bf16.msra.mxu0 0
        %2307 = vmatprep.mubr.bf16.mxu0 0
        %2308 = vmatmul.mubr.bf16.gmra.mrb[0].mxu0 %v2273
        %v2309 = vpop.f32.mrb[0].mxu0
        %v2310 = vadd.f32 0.0, %v2309
        %v2311 = vpop.f32.mrb[0].mxu0
        %v2312 = vpop.f32.mrb[0].mxu0
        %v2313 = vadd.f32 0.0, %v2312
        %v2314 = vpop.f32.mrb[0].mxu0
        %2315 = vdwg.mxu0
        %v2317 = vsel %vm1347, %v2007, 0
        %2319 = vmatprep.subr.bf16.mxu0 0
        %2320 = vmatpush1.bf16.msra.mxu0 %v1422
        %2321 = vmatprep.subr.bf16.mxu0 0
        %2322 = vmatpush1.bf16.msra.mxu0 %v1423
        %2323 = vmatprep.subr.bf16.mxu0 0
        %2324 = vmatpush1.bf16.msra.mxu0 0
        %2325 = vmatprep.subr.bf16.mxu0 0
        %2326 = vmatpush1.bf16.msra.mxu0 0
        %2327 = vmatprep.subr.bf16.mxu0 0
        %2328 = vmatpush1.bf16.msra.mxu0 0
        %2329 = vmatprep.subr.bf16.mxu0 0
        %2330 = vmatpush1.bf16.msra.mxu0 0
        %2331 = vmatprep.subr.bf16.mxu0 0
        %2332 = vmatpush1.bf16.msra.mxu0 0
        %2333 = vmatprep.subr.bf16.mxu0 0
        %2334 = vmatpush1.bf16.msra.mxu0 0
        %2335 = vmatprep.subr.bf16.mxu0 0
        %2336 = vmatpush1.bf16.msra.mxu0 0
        %2337 = vmatprep.subr.bf16.mxu0 0
        %2338 = vmatpush1.bf16.msra.mxu0 0
        %2339 = vmatprep.subr.bf16.mxu0 0
        %2340 = vmatpush1.bf16.msra.mxu0 0
        %2341 = vmatprep.subr.bf16.mxu0 0
        %2342 = vmatpush1.bf16.msra.mxu0 0
        %2343 = vmatprep.subr.bf16.mxu0 0
        %2344 = vmatpush1.bf16.msra.mxu0 0
        %2345 = vmatprep.subr.bf16.mxu0 0
        %2346 = vmatpush1.bf16.msra.mxu0 0
        %2347 = vmatprep.subr.bf16.mxu0 0
        %2348 = vmatpush1.bf16.msra.mxu0 0
        %2349 = vmatprep.subr.bf16.mxu0 0
        %2350 = vmatpush1.bf16.msra.mxu0 0
        %2351 = vmatprep.mubr.bf16.mxu0 0
        %2352 = vmatmul.mubr.bf16.gmra.mrb[0].mxu0 %v2317
        %v2353 = vpop.f32.mrb[0].mxu0
        %v2354 = vadd.f32 0.0, %v2353
        %v2355 = vpop.f32.mrb[0].mxu0
        %v2356 = vpop.f32.mrb[0].mxu0
        %v2357 = vadd.f32 0.0, %v2356
        %v2358 = vpop.f32.mrb[0].mxu0
        %2359 = vdwg.mxu0
        %2362 = vrot.lane.b32.xlu0 %v2090, 32
        %v2363 = vpop.permute.xlu0 %2362
        %2364 = vrot.lane.b32.xlu0 %v2093, 32
        %v2365 = vpop.permute.xlu0 %2364
        %2370 = vrot.lane.b32.xlu0 %v2134, 64
        %v2371 = vpop.permute.xlu0 %2370
        %2372 = vrot.lane.b32.xlu0 %v2137, 64
        %v2373 = vpop.permute.xlu0 %2372
        %2378 = vrot.lane.b32.xlu0 %v2178, 96
        %v2379 = vpop.permute.xlu0 %2378
        %2380 = vrot.lane.b32.xlu0 %v2181, 96
        %v2381 = vpop.permute.xlu0 %2380
        %2386 = vrot.lane.b32.xlu0 %v2266, 32
        %v2387 = vpop.permute.xlu0 %2386
        %2388 = vrot.lane.b32.xlu0 %v2269, 32
        %v2389 = vpop.permute.xlu0 %2388
        %2394 = vrot.lane.b32.xlu0 %v2310, 64
        %v2395 = vpop.permute.xlu0 %2394
        %2396 = vrot.lane.b32.xlu0 %v2313, 64
        %v2397 = vpop.permute.xlu0 %2396
        %2402 = vrot.lane.b32.xlu0 %v2354, 96
        %v2403 = vpop.permute.xlu0 %2402
        %2404 = vrot.lane.b32.xlu0 %v2357, 96
        %v2405 = vpop.permute.xlu0 %2404
        %v2408 = vsel %vm1347, %v2046, %v2363
        %v2409 = vsel %vm1347, %v2049, %v2365
        %vm2410 = vcmask 523264
        %v2411 = vsel %vm2410, %v2408, %v2371
        %v2412 = vsel %vm2410, %v2409, %v2373
        %vm2413 = vcmask 785408
        %v2414 = vsel %vm2413, %v2411, %v2379
        %v2415 = vsel %vm2413, %v2412, %v2381
        %v2416 = vsel %vm1347, %v2222, %v2387
        %v2417 = vsel %vm1347, %v2225, %v2389
        %v2418 = vsel %vm2410, %v2416, %v2395
        %v2419 = vsel %vm2410, %v2417, %v2397
        %v2420 = vsel %vm2413, %v2418, %v2403
        %v2421 = vsel %vm2413, %v2419, %v2405
        %v2422 = vpack.c.bf16 %v2415, %v2414
        %v2423 = vpack.c.bf16 %v2421, %v2420
        %v2424 = vld [vmem:[#allocation12] sm:$0xff]
        %v2425 = vld [vmem:[#allocation12 + $0x8] sm:$0xff]
        %v2426 = vld [vmem:[#allocation12 + $0x10] sm:$0xff]
        %v2427 = vld [vmem:[#allocation12 + $0x18] sm:$0xff]
        %v2428 = vld [vmem:[#allocation12 + $0x20] sm:$0xff]
        %v2429 = vld [vmem:[#allocation12 + $0x28] sm:$0xff]
        %v2430 = vld [vmem:[#allocation12 + $0x30] sm:$0xff]
        %v2431 = vld [vmem:[#allocation12 + $0x38] sm:$0xff]
        %v2432 = vld [vmem:[#allocation12 + $0x40] sm:$0xff]
        %v2433 = vld [vmem:[#allocation12 + $0x48] sm:$0xff]
        %v2434 = vld [vmem:[#allocation12 + $0x50] sm:$0xff]
        %v2435 = vld [vmem:[#allocation12 + $0x58] sm:$0xff]
        %v2436 = vld [vmem:[#allocation12 + $0x60] sm:$0xff]
        %v2437 = vld [vmem:[#allocation12 + $0x68] sm:$0xff]
        %v2438 = vld [vmem:[#allocation12 + $0x70] sm:$0xff]
        %v2439 = vld [vmem:[#allocation12 + $0x78] sm:$0xff]
        %v2440 = vld [vmem:[#allocation12 + $0x80] sm:$0xff]
        %v2441 = vld [vmem:[#allocation12 + $0x88] sm:$0xff]
        %v2442 = vld [vmem:[#allocation12 + $0x90] sm:$0xff]
        %v2443 = vld [vmem:[#allocation12 + $0x98] sm:$0xff]
        %v2444 = vld [vmem:[#allocation12 + $0xa0] sm:$0xff]
        %v2445 = vld [vmem:[#allocation12 + $0xa8] sm:$0xff]
        %v2446 = vld [vmem:[#allocation12 + $0xb0] sm:$0xff]
        %v2447 = vld [vmem:[#allocation12 + $0xb8] sm:$0xff]
        %v2448 = vld [vmem:[#allocation12 + $0xc0] sm:$0xff]
        %v2449 = vld [vmem:[#allocation12 + $0xc8] sm:$0xff]
        %v2450 = vld [vmem:[#allocation12 + $0xd0] sm:$0xff]
        %v2451 = vld [vmem:[#allocation12 + $0xd8] sm:$0xff]
        %v2452 = vld [vmem:[#allocation12 + $0xe0] sm:$0xff]
        %v2453 = vld [vmem:[#allocation12 + $0xe8] sm:$0xff]
        %v2454 = vld [vmem:[#allocation12 + $0xf0] sm:$0xff]
        %v2455 = vld [vmem:[#allocation12 + $0xf8] sm:$0xff]
        %v2456 = vld [vmem:[%s7] sm:$0x3]
        %v2458 = vlaneseq
        %v2459 = vshrl.u32 %v2458, 7
        %v2460 = vsub.s32 0, %v2459
        %v2461 = vrot.slane %v2456, %v2460
        %v2462 = vlaneseq
        %v2463 = vshrl.u32 %v2462, 7
        %v2464 = vsub.s32 1, %v2463
        %v2465 = vrot.slane %v2456, %v2464
        %v2500 = vunpack.c.l.b16 %v2424
        %v2501 = vunpack.c.h.b16 %v2424
        %v2502 = vunpack.c.l.b16 %v2425
        %v2503 = vunpack.c.h.b16 %v2425
        %v2504 = vunpack.c.l.b16 %v2426
        %v2505 = vunpack.c.h.b16 %v2426
        %v2506 = vunpack.c.l.b16 %v2427
        %v2507 = vunpack.c.h.b16 %v2427
        %v2508 = vunpack.c.l.b16 %v2428
        %v2509 = vunpack.c.h.b16 %v2428
        %v2510 = vunpack.c.l.b16 %v2429
        %v2511 = vunpack.c.h.b16 %v2429
        %v2512 = vunpack.c.l.b16 %v2430
        %v2513 = vunpack.c.h.b16 %v2430
        %v2514 = vunpack.c.l.b16 %v2431
        %v2515 = vunpack.c.h.b16 %v2431
        %v2516 = vunpack.c.l.b16 %v2432
        %v2517 = vunpack.c.h.b16 %v2432
        %v2518 = vunpack.c.l.b16 %v2433
        %v2519 = vunpack.c.h.b16 %v2433
        %v2520 = vunpack.c.l.b16 %v2434
        %v2521 = vunpack.c.h.b16 %v2434
        %v2522 = vunpack.c.l.b16 %v2435
        %v2523 = vunpack.c.h.b16 %v2435
        %v2524 = vunpack.c.l.b16 %v2436
        %v2525 = vunpack.c.h.b16 %v2436
        %v2526 = vunpack.c.l.b16 %v2437
        %v2527 = vunpack.c.h.b16 %v2437
        %v2528 = vunpack.c.l.b16 %v2438
        %v2529 = vunpack.c.h.b16 %v2438
        %v2530 = vunpack.c.l.b16 %v2439
        %v2531 = vunpack.c.h.b16 %v2439
        %v2532 = vunpack.c.l.b16 %v2440
        %v2533 = vunpack.c.h.b16 %v2440
        %v2534 = vunpack.c.l.b16 %v2441
        %v2535 = vunpack.c.h.b16 %v2441
        %v2536 = vunpack.c.l.b16 %v2442
        %v2537 = vunpack.c.h.b16 %v2442
        %v2538 = vunpack.c.l.b16 %v2443
        %v2539 = vunpack.c.h.b16 %v2443
        %v2540 = vunpack.c.l.b16 %v2444
        %v2541 = vunpack.c.h.b16 %v2444
        %v2542 = vunpack.c.l.b16 %v2445
        %v2543 = vunpack.c.h.b16 %v2445
        %v2544 = vunpack.c.l.b16 %v2446
        %v2545 = vunpack.c.h.b16 %v2446
        %v2546 = vunpack.c.l.b16 %v2447
        %v2547 = vunpack.c.h.b16 %v2447
        %v2548 = vunpack.c.l.b16 %v2448
        %v2549 = vunpack.c.h.b16 %v2448
        %v2550 = vunpack.c.l.b16 %v2449
        %v2551 = vunpack.c.h.b16 %v2449
        %v2552 = vunpack.c.l.b16 %v2450
        %v2553 = vunpack.c.h.b16 %v2450
        %v2554 = vunpack.c.l.b16 %v2451
        %v2555 = vunpack.c.h.b16 %v2451
        %v2556 = vunpack.c.l.b16 %v2452
        %v2557 = vunpack.c.h.b16 %v2452
        %v2558 = vunpack.c.l.b16 %v2453
        %v2559 = vunpack.c.h.b16 %v2453
        %v2560 = vunpack.c.l.b16 %v2454
        %v2561 = vunpack.c.h.b16 %v2454
        %v2562 = vunpack.c.l.b16 %v2455
        %v2563 = vunpack.c.h.b16 %v2455
        %v2564 = vpack.c.b16 %v2502, %v2500
        %v2565 = vpack.c.b16 %v2503, %v2501
        %v2566 = vpack.c.b16 %v2506, %v2504
        %v2567 = vpack.c.b16 %v2507, %v2505
        %v2568 = vpack.c.b16 %v2510, %v2508
        %v2569 = vpack.c.b16 %v2511, %v2509
        %v2570 = vpack.c.b16 %v2514, %v2512
        %v2571 = vpack.c.b16 %v2515, %v2513
        %v2572 = vpack.c.b16 %v2518, %v2516
        %v2573 = vpack.c.b16 %v2519, %v2517
        %v2574 = vpack.c.b16 %v2522, %v2520
        %v2575 = vpack.c.b16 %v2523, %v2521
        %v2576 = vpack.c.b16 %v2526, %v2524
        %v2577 = vpack.c.b16 %v2527, %v2525
        %v2578 = vpack.c.b16 %v2530, %v2528
        %v2579 = vpack.c.b16 %v2531, %v2529
        %v2580 = vpack.c.b16 %v2534, %v2532
        %v2581 = vpack.c.b16 %v2535, %v2533
        %v2582 = vpack.c.b16 %v2538, %v2536
        %v2583 = vpack.c.b16 %v2539, %v2537
        %v2584 = vpack.c.b16 %v2542, %v2540
        %v2585 = vpack.c.b16 %v2543, %v2541
        %v2586 = vpack.c.b16 %v2546, %v2544
        %v2587 = vpack.c.b16 %v2547, %v2545
        %v2588 = vpack.c.b16 %v2550, %v2548
        %v2589 = vpack.c.b16 %v2551, %v2549
        %v2590 = vpack.c.b16 %v2554, %v2552
        %v2591 = vpack.c.b16 %v2555, %v2553
        %v2592 = vpack.c.b16 %v2558, %v2556
        %v2593 = vpack.c.b16 %v2559, %v2557
        %v2594 = vpack.c.b16 %v2562, %v2560
        %v2595 = vpack.c.b16 %v2563, %v2561
        %2628 = vmatprep.subr.bf16.mxu0 %v2565
        %2629 = vmatpush1.bf16.msra.mxu0 %v2564
        %2630 = vmatprep.subr.bf16.mxu0 %v2567
        %2631 = vmatpush1.bf16.msra.mxu0 %v2566
        %2632 = vmatprep.subr.bf16.mxu0 %v2569
        %2633 = vmatpush1.bf16.msra.mxu0 %v2568
        %2634 = vmatprep.subr.bf16.mxu0 %v2571
        %2635 = vmatpush1.bf16.msra.mxu0 %v2570
        %2636 = vmatprep.subr.bf16.mxu0 %v2573
        %2637 = vmatpush1.bf16.msra.mxu0 %v2572
        %2638 = vmatprep.subr.bf16.mxu0 %v2575
        %2639 = vmatpush1.bf16.msra.mxu0 %v2574
        %2640 = vmatprep.subr.bf16.mxu0 %v2577
        %2641 = vmatpush1.bf16.msra.mxu0 %v2576
        %2642 = vmatprep.subr.bf16.mxu0 %v2579
        %2643 = vmatpush1.bf16.msra.mxu0 %v2578
        %2644 = vmatprep.subr.bf16.mxu0 %v2581
        %2645 = vmatpush1.bf16.msra.mxu0 %v2580
        %2646 = vmatprep.subr.bf16.mxu0 %v2583
        %2647 = vmatpush1.bf16.msra.mxu0 %v2582
        %2648 = vmatprep.subr.bf16.mxu0 %v2585
        %2649 = vmatpush1.bf16.msra.mxu0 %v2584
        %2650 = vmatprep.subr.bf16.mxu0 %v2587
        %2651 = vmatpush1.bf16.msra.mxu0 %v2586
        %2652 = vmatprep.subr.bf16.mxu0 %v2589
        %2653 = vmatpush1.bf16.msra.mxu0 %v2588
        %2654 = vmatprep.subr.bf16.mxu0 %v2591
        %2655 = vmatpush1.bf16.msra.mxu0 %v2590
        %2656 = vmatprep.subr.bf16.mxu0 %v2593
        %2657 = vmatpush1.bf16.msra.mxu0 %v2592
        %2658 = vmatprep.subr.bf16.mxu0 %v2595
        %2659 = vmatpush1.bf16.msra.mxu0 %v2594
        %2660 = vmatprep.mubr.bf16.mxu0 %v2423
        %2661 = vmatmul.mubr.bf16.gmra.mrb[0].mxu0 %v2422
        %v2662 = vpop.f32.mrb[0].mxu0
        %v2663 = vadd.f32 %v2461, %v2662
        %v2664 = vpop.f32.mrb[0].mxu0
        %v2665 = vadd.f32 %v2465, %v2664
        %v2666 = vpop.f32.mrb[0].mxu0
        %v2667 = vadd.f32 %v2461, %v2666
        %v2668 = vpop.f32.mrb[0].mxu0
        %v2669 = vadd.f32 %v2465, %v2668
        %2670 = vdwg.mxu0
        %2671 = vst [vmem:[%s425] sm:$0xff] %v2663
        %2672 = vst [vmem:[%s425 + $0x8] sm:$0xff] %v2665
        %2673 = vst [vmem:[%s425 + $0x10] sm:$0xff] %v2667
        %2674 = vst [vmem:[%s425 + $0x18] sm:$0xff] %v2669
        %s2675 = sand.u32 %s231, 1
        %s2676 = scalar_lea.sflag [#allocation6], %s2675
        %s2677 = sand.u32 %s231, 1
        %s2678 = smul.addr %s2677, 32
        %s2679 = scalar_lea.vmem [#allocation13], %s2678
        // Predicated region
        $region77: #{tpu_custom_call.1} parent=51 // pred_check
          %p2680 = pneg %p241
        $region78: #{tpu_custom_call.1} parent=51 // pred_check_branch
          %2682 = sbr.rel (%p2680) target = $region80
        $region79: #{tpu_custom_call.1} parent=51 // pred_region
          %s2683 = smul.u32 2, %s34
          %s2685 = ssub.s32 512, 512
          %2686 = vsyncadd %s2676, %s2685
          %s2687 = smul.addr %s2683, 2
          %s2688 = smul.addr %s33, 8
          %s2689 = sadd.s32 %s2687, %s2688
          %s2690 = smul.addr %s2689, 128
          %s2691 = scalar_lea.hbm %s8, %s2690
          %s2692 = sshll.u32 %s2679, 4
          %s2693 = int_to_ptr.vmem [resolvable:$true] %s2692
          %2698 = dma.vmem_to_hbm [thread:$0]  %s2693, 512, %s2691, %s2676, 256, 256, 16
        $region80: #{tpu_custom_call.1} parent=51 // pred_fallthru
          _
      $region52: #{tpu_custom_call.1} parent=5 // pred_fallthru
        _
      %p2699 = scmp.le.s32.totalorder 2, %s24
      // Predicated region
      $region81: #{tpu_custom_call.1} parent=5 // pred_check
        %p2700 = pneg %p2699
      $region82: #{tpu_custom_call.1} parent=5 // pred_check_branch
        %2702 = sbr.rel (%p2700) target = $region84
      $region83: #{tpu_custom_call.1} parent=5 // pred_region
        %s2703 = ssub.s32 %s24, 2
        // Predicated region
        $region85: #{tpu_custom_call.1} parent=83 // pred_check
          %p2704 = pneg %p247
        $region86: #{tpu_custom_call.1} parent=83 // pred_check_branch
          %2706 = sbr.rel (%p2704) target = $region88
        $region87: #{tpu_custom_call.1} parent=83 // pred_region
          %s2707 = sand.u32 %s232, 1
          %s2708 = scalar_lea.sflag [#allocation6], %s2707
          %s2709 = sand.u32 %s232, 1
          %s2710 = smul.addr %s2709, 32
          %s2711 = scalar_lea.vmem [#allocation13], %s2710
          %2712 = dma.done %s2708, 512
        $region88: #{tpu_custom_call.1} parent=83 // pred_fallthru
          _
      $region84: #{tpu_custom_call.1} parent=5 // pred_fallthru
        _
    $region6: #{tpu_custom_call.1} parent=1 // loop_footer
      %s28 = sadd.s32 1, %s24
    $region7: #{tpu_custom_call.1} parent=1 // loop_footer_branch
      %23 = sbr.rel target = $region3
    $region8: #{tpu_custom_call.1} parent=1 // loop_exit
      _
    %2713 = vsyncpa [#allocation5], 1
    %s2714 = scalar_lea.sflag [#allocation5], 1
    %2715 = vsyncpa %s2714, 1
    %2716 = vsyncpa [#allocation8], 1
    %s2717 = scalar_lea.sflag [#allocation8], 1
    %2718 = vsyncpa %s2717, 1
    %2719 = vsyncpa [#allocation11], 1
    %2720 = vsyncpa [#allocation6], 1
    %s2721 = scalar_lea.sflag [#allocation6], 1
    %2722 = vsyncpa %s2721, 1

</llo_original>
